<compile_context>
chip_gen: v7x
topology: tpu7x:2x2x1
jax: 0.10.0
libtpu: 0.0.40
codegen_flags: <defaults>
</compile_context>

<pallas_src>
import functools

import jax
import jax.numpy as jnp
from jax import lax
from jax.experimental import pallas as pl
from jax.experimental.pallas import tpu as pltpu


def trans_encoder_kernel(x_ref, npad_ref, kbias_ref,
                         wqkv_ref, bqkv_ref, fcw_ref, fcb_ref,
                         ln1g_ref, ln1b_ref,
                         w1_ref, b1_ref, w2_ref, b2_ref,
                         ln2g_ref, ln2b_ref,
                         out_ref, act_ref,
                         *, n_head, d_k, d_v, eps, ffn_chunk):
    l = pl.program_id(1)
    n_layers = pl.num_programs(1)

    # Layer 0: load the batch-tile activation into the resident VMEM carry.
    @pl.when(l == 0)
    def _():
        act_ref[...] = x_ref[...].astype(act_ref.dtype)

    Bt, L, D = act_ref.shape
    BtL = Bt * L
    Hdk = n_head * d_k
    Hdv = n_head * d_v

    cur = act_ref[...].astype(jnp.float32)                 # (Bt, L, D) layer input
    x2 = cur.reshape(BtL, D)                               # collapse leading dims (cheap)
    xb = x2.astype(jnp.bfloat16)

    npad = npad_ref[...].astype(jnp.float32).reshape(BtL, 1)   # (BtL, 1) non-pad multiplier
    kbias = kbias_ref[...]                                     # (Bt, 1, L) additive key bias

    # ---- fused q/k/v projection: ONE wide matmul (1/sqrt(d_k) pre-folded on host) ----
    qkv = jnp.dot(xb, wqkv_ref[0], preferred_element_type=jnp.float32) + bqkv_ref[0]
    qb = qkv[:, :Hdk].astype(jnp.bfloat16)
    kb = qkv[:, Hdk:2 * Hdk].astype(jnp.bfloat16)
    vb = qkv[:, 2 * Hdk:2 * Hdk + Hdv].astype(jnp.bfloat16)

    # ---- per-head scaled-dot-product attention (softmax in f32) ----------------------
    heads = []
    for h in range(n_head):                                # static, small head count
        qh = qb[:, h * d_k:(h + 1) * d_k].reshape(Bt, L, d_k)
        kh = kb[:, h * d_k:(h + 1) * d_k].reshape(Bt, L, d_k)
        vh = vb[:, h * d_v:(h + 1) * d_v].reshape(Bt, L, d_v)

        s = jnp.einsum('bqd,bkd->bqk', qh, kh,
                       preferred_element_type=jnp.float32)             # (Bt, L, L)
        s = s + kbias                                                   # masked_fill via -1e30 bias
        s_max = jnp.max(s, axis=-1, keepdims=True)
        p = jnp.exp(s - s_max)
        p = p * pl.reciprocal(jnp.sum(p, axis=-1, keepdims=True), approx=True)
        o = jnp.einsum('bqk,bkd->bqd', p.astype(jnp.bfloat16), vh,
                       preferred_element_type=jnp.float32)              # (Bt, L, d_v)
        heads.append(o.reshape(BtL, d_v))

    # Heads concatenated -> ONE full-contraction output projection on the MXU.
    o_all = (jnp.concatenate(heads, axis=-1) if n_head > 1 else heads[0]).astype(jnp.bfloat16)
    y = x2 + fcb_ref[0] + jnp.dot(o_all, fcw_ref[0], preferred_element_type=jnp.float32)

    # LayerNorm 1 (f32) + non_pad_mask
    mu = jnp.mean(y, axis=-1, keepdims=True)
    var = jnp.mean((y - mu) * (y - mu), axis=-1, keepdims=True)
    y = (y - mu) * lax.rsqrt(var + eps) * ln1g_ref[0] + ln1b_ref[0]
    y = y * npad

    # ---- position-wise FFN (Conv1d k=1 == Linear), chunked over d_inner --------------
    yb = y.astype(jnp.bfloat16)
    d_inner = w1_ref.shape[2]
    n_chunks = d_inner // ffn_chunk
    ffn = jnp.zeros((BtL, D), jnp.float32)
    for c in range(n_chunks):                              # static chunk loop bounds live h1
        c0, c1 = c * ffn_chunk, (c + 1) * ffn_chunk
        h1 = jnp.dot(yb, w1_ref[0, :, c0:c1],
                     preferred_element_type=jnp.float32) + b1_ref[0, :, c0:c1]
        h1 = jnp.maximum(h1, 0.0)                          # ReLU (f32)
        ffn = ffn + jnp.dot(h1.astype(jnp.bfloat16), w2_ref[0, c0:c1, :],
                            preferred_element_type=jnp.float32)
    z = ffn + b2_ref[0] + y                                # bias + residual

    # LayerNorm 2 (f32) + non_pad_mask
    mu2 = jnp.mean(z, axis=-1, keepdims=True)
    var2 = jnp.mean((z - mu2) * (z - mu2), axis=-1, keepdims=True)
    z = (z - mu2) * lax.rsqrt(var2 + eps) * ln2g_ref[0] + ln2b_ref[0]
    z = z * npad

    z3 = z.reshape(Bt, L, D)
    act_ref[...] = z3.astype(act_ref.dtype)                # carry to next layer (stays in VMEM)

    @pl.when(l == n_layers - 1)
    def _():
        out_ref[...] = z3.astype(out_ref.dtype)


def _vmem_capacity_bytes():
    try:
        return int(pltpu.get_tpu_info().vmem_capacity_bytes)
    except Exception:
        return 64 * 1024 * 1024          # conservative (v7x-sized) fallback


def _ffn_chunk(d_inner, target=512):
    if d_inner <= target:
        return d_inner
    for ck in range(target, 127, -128):
        if d_inner % ck == 0:
            return ck
    return d_inner


def _pick_batch_tile(B, L, D, n_head, d_k, d_v, ffn_chunk,
                     per_layer_weight_bytes, vmem_limit, act_bytes, num_tc):
    d_qkv = 2 * n_head * d_k + n_head * d_v
    # rough per-batch-row live VMEM (f32 unless noted)
    per_b = (
        2 * L * D * 4                                   # x input block (double-buffered)
        + L * D * act_bytes                             # resident activation carry
        + 2 * L * D * 4                                 # out block (double-buffered, upper bound)
        + L * d_qkv * (4 + 2)                           # qkv f32 + bf16 views
        + 3 * L * L * 4                                 # s / p / p_bf16 for the live head
        + n_head * L * d_v * 4 + L * n_head * d_v * 2   # per-head outputs + concat (bf16)
        + 3 * L * D * 4 + L * D * 2                     # y, z, ffn acc (+ yb bf16)
        + L * ffn_chunk * (4 + 2)                       # h1 chunk f32 + bf16
    )
    budget = vmem_limit - 2 * per_layer_weight_bytes - (2 << 20)   # 2x double-buffered weights + headroom
    bt = int(max(1, min(B, budget // max(per_b, 1))))
    if num_tc >= 2 and B >= 2:
        bt = min(bt, max(1, B // 2))   # keep >= num_tc parallel grid units for megacore
    while B % bt:                      # require an even split of the batch
        bt -= 1
    return bt


def _layer_spec(arr):
    """BlockSpec for a per-layer stacked parameter: one layer's slab per grid step."""
    ndim = arr.ndim

    def idx(b, l):
        return (l,) + (0,) * (ndim - 1)

    return pl.BlockSpec((1,) + tuple(arr.shape[1:]), idx)


def trans_encoder(enc_output, non_pad_mask, slf_attn_mask, layer_params,
                  *, n_head, d_k, d_v):
    """Forward of Trans_Encoder (return_attns=False path).

    non_pad_mask: (B, L) or (B, L, 1), 1 == real token.
    slf_attn_mask: (B, L) / (B, 1, L) key-padding mask (nonzero == padded key), or
                   (B, L, L) as in the PyTorch module (collapsed to its key-padding row).
    """
    B, L, D = enc_output.shape
    n_layers = len(layer_params)
    d_inner = layer_params[0]["w1"].shape[1]

    f32, bf16 = jnp.float32, jnp.bfloat16

    # non_pad_mask -> (B, L, 1) multiplier
    npad = non_pad_mask.astype(f32)
    if npad.ndim == 2:
        npad = npad[..., None]
    npad = npad.reshape(B, L, 1)

    # slf_attn_mask -> (B, 1, L) additive key-padding bias (0 attend / -1e30 masked).
    m = slf_attn_mask
    if m.ndim == 3:
        # TODO(synk): generic per-query (B, L, L) masks are collapsed to their key-padding row;
        # the CosmosQA pipeline only builds key-padding masks, for which this is exact.
        m = m[:, 0, :]
    kbias = jnp.where(m != 0, -1e30, 0.0).astype(f32).reshape(B, 1, L)

    inv_temp = 1.0 / (d_k ** 0.5)

    def qkv_w(p):   # 1/sqrt(d_k) folded into the q slice
        return jnp.concatenate([p["wq"] * inv_temp, p["wk"], p["wv"]], axis=1)

    def qkv_b(p):
        return jnp.concatenate([p["bq"] * inv_temp, p["bk"], p["bv"]], axis=1)

    stack_fn = lambda fn, dt: jnp.stack([fn(p) for p in layer_params]).astype(dt)
    get = lambda name, dt: jnp.stack([p[name] for p in layer_params]).astype(dt)

    wqkv = stack_fn(qkv_w, bf16)
    bqkv = stack_fn(qkv_b, f32)
    fcw, fcb = get("fcw", bf16), get("fcb", f32)           # (n_layers, n_head*d_v, D) — un-split
    ln1g, ln1b = get("ln1g", f32), get("ln1b", f32)
    w1, b1 = get("w1", bf16), get("b1", f32)
    w2, b2 = get("w2", bf16), get("b2", f32)
    ln2g, ln2b = get("ln2g", f32), get("ln2b", f32)

    weight_arrays = [wqkv, bqkv, fcw, fcb, ln1g, ln1b, w1, b1, w2, b2, ln2g, ln2b]
    per_layer_weight_bytes = sum(a.size * a.dtype.itemsize for a in weight_arrays) // n_layers

    # Generation-aware VMEM budgeting.
    vmem_cap = _vmem_capacity_bytes()
    vmem_limit = int(min(0.85 * vmem_cap, 100 * 1024 * 1024))     # ~54 MiB on v7x, ~100 MiB on v5e/v6e
    if vmem_cap <= 80 * 1024 * 1024:       # v7x-sized VMEM <=> 2 TensorCores, keep carry in bf16
        num_tc, act_dtype, act_bytes = 2, bf16, 2
    else:                                  # v5e / v6e: single TensorCore, f32 carry
        num_tc, act_dtype, act_bytes = 1, f32, 4

    ck = _ffn_chunk(d_inner)
    bt = _pick_batch_tile(B, L, D, n_head, d_k, d_v, ck,
                          per_layer_weight_bytes, vmem_limit, act_bytes, num_tc)
    grid = (B // bt, n_layers)

    in_specs = [
        pl.BlockSpec((bt, L, D), lambda b, l: (b, 0, 0)),   # x (index constant in l -> fetched once)
        pl.BlockSpec((bt, L, 1), lambda b, l: (b, 0, 0)),   # non_pad_mask
        pl.BlockSpec((bt, 1, L), lambda b, l: (b, 0, 0)),   # additive key-padding bias (lane-dense)
    ] + [_layer_spec(a) for a in weight_arrays]

    kernel = functools.partial(trans_encoder_kernel,
                               n_head=n_head, d_k=d_k, d_v=d_v,
                               eps=1e-5, ffn_chunk=ck)

    return pl.pallas_call(
        kernel,
        out_shape=jax.ShapeDtypeStruct((B, L, D), enc_output.dtype),
        grid_spec=pltpu.PrefetchScalarGridSpec(
            num_scalar_prefetch=0,
            grid=grid,
            in_specs=in_specs,
            out_specs=pl.BlockSpec((bt, L, D), lambda b, l: (b, 0, 0)),
            scratch_shapes=[pltpu.VMEM((bt, L, D), act_dtype)],   # resident activation carry
        ),
        compiler_params=pltpu.CompilerParams(
            dimension_semantics=("parallel", "arbitrary"),
            vmem_limit_bytes=vmem_limit,
        ),
    )(enc_output, npad, kbias, *weight_arrays)


def init_layer_params(key, d_model, d_inner, n_head, d_k, d_v):
    # NOTE: weights are stored input-major (x @ W), i.e. transposed vs. torch Linear.weight.
    ks = jax.random.split(key, 10)
    s = 0.05
    f32 = jnp.float32
    return {
        "wq": jax.random.normal(ks[0], (d_model, n_head * d_k), f32) * s,
        "bq": jax.random.normal(ks[1], (1, n_head * d_k), f32) * s,
        "wk": jax.random.normal(ks[2], (d_model, n_head * d_k), f32) * s,
        "bk": jax.random.normal(ks[3], (1, n_head * d_k), f32) * s,
        "wv": jax.random.normal(ks[4], (d_model, n_head * d_v), f32) * s,
        "bv": jax.random.normal(ks[5], (1, n_head * d_v), f32) * s,
        "fcw": jax.random.normal(ks[6], (n_head * d_v, d_model), f32) * s,
        "fcb": jnp.zeros((1, d_model), f32),
        "ln1g": jnp.ones((1, d_model), f32),
        "ln1b": jnp.zeros((1, d_model), f32),
        "w1": jax.random.normal(ks[7], (d_model, d_inner), f32) * s,
        "b1": jax.random.normal(ks[8], (1, d_inner), f32) * s,
        "w2": jax.random.normal(ks[9], (d_inner, d_model), f32) * s,
        "b2": jnp.zeros((1, d_model), f32),
        "ln2g": jnp.ones((1, d_model), f32),
        "ln2b": jnp.zeros((1, d_model), f32),
    }


if __name__ == "__main__":
    # Small but layout-realistic config (D multiple of 128, L multiple of 8).
    n_layers, n_head, d_k, d_v = 2, 2, 64, 64
    d_model, d_inner = 128, 256
    B, L = 2, 8

    root = jax.random.PRNGKey(0)
    k_x, k_p = jax.random.split(root)

    enc_output = jax.random.normal(k_x, (B, L, d_model), jnp.float32)

    # lengths -> padding masks (as in the original pipeline)
    lengths = jnp.array([8, 6], dtype=jnp.int32)
    pos = jnp.arange(L)
    non_pad_mask = (pos[None, :] < lengths[:, None]).astype(jnp.float32)[..., None]  # (B, L, 1)
    slf_attn_mask = (pos[None, :] >= lengths[:, None]).astype(jnp.int8)              # (B, L): 1 == padded key

    layer_keys = jax.random.split(k_p, n_layers)
    layer_params = [init_layer_params(k, d_model, d_inner, n_head, d_k, d_v)
                    for k in layer_keys]

    out = trans_encoder(enc_output, non_pad_mask, slf_attn_mask, layer_params,
                        n_head=n_head, d_k=d_k, d_v=d_v)
    out = jax.block_until_ready(out)
    assert out.shape == (B, L, d_model)
    assert bool(jnp.all(jnp.isfinite(out)))
    print("KERNEL_OK")
</pallas_src>

<mosaic_0001>
module attributes {stable_mosaic.version = 11 : i64} {
  func.func @trans_encoder_kernel(%arg0: i32, %arg1: i32, %arg2: memref<1x8x128xf32, #tpu.memory_space<vmem>>, %arg3: memref<1x8x1xf32, #tpu.memory_space<vmem>>, %arg4: memref<1x1x8xf32, #tpu.memory_space<vmem>>, %arg5: memref<1x128x384xbf16, #tpu.memory_space<vmem>>, %arg6: memref<1x1x384xf32, #tpu.memory_space<vmem>>, %arg7: memref<1x128x128xbf16, #tpu.memory_space<vmem>>, %arg8: memref<1x1x128xf32, #tpu.memory_space<vmem>>, %arg9: memref<1x1x128xf32, #tpu.memory_space<vmem>>, %arg10: memref<1x1x128xf32, #tpu.memory_space<vmem>>, %arg11: memref<1x128x256xbf16, #tpu.memory_space<vmem>>, %arg12: memref<1x1x256xf32, #tpu.memory_space<vmem>>, %arg13: memref<1x256x128xbf16, #tpu.memory_space<vmem>>, %arg14: memref<1x1x128xf32, #tpu.memory_space<vmem>>, %arg15: memref<1x1x128xf32, #tpu.memory_space<vmem>>, %arg16: memref<1x1x128xf32, #tpu.memory_space<vmem>>, %arg17: memref<1x8x128xf32, #tpu.memory_space<vmem>>, %arg18: memref<1x8x128xbf16, #tpu.memory_space<vmem>>) attributes {dimension_semantics = [#tpu.dimension_semantics<parallel>, #tpu.dimension_semantics<arbitrary>], iteration_bounds = array<i64: 2, 2>, scalar_prefetch = 0 : i64, scratch_operands = 1 : i64, tpu.core_type = #tpu.core_type<tc>, window_params = [{transform_indices = @transform_0, window_bounds = array<i64: 1, 8, 128>}, {transform_indices = @transform_1, window_bounds = array<i64: 1, 8, 1>}, {transform_indices = @transform_2, window_bounds = array<i64: 1, 1, 8>}, {transform_indices = @transform_3, window_bounds = array<i64: 1, 128, 384>}, {transform_indices = @transform_4, window_bounds = array<i64: 1, 1, 384>}, {transform_indices = @transform_5, window_bounds = array<i64: 1, 128, 128>}, {transform_indices = @transform_6, window_bounds = array<i64: 1, 1, 128>}, {transform_indices = @transform_7, window_bounds = array<i64: 1, 1, 128>}, {transform_indices = @transform_8, window_bounds = array<i64: 1, 1, 128>}, {transform_indices = @transform_9, window_bounds = array<i64: 1, 128, 256>}, {transform_indices = @transform_10, window_bounds = array<i64: 1, 1, 256>}, {transform_indices = @transform_11, window_bounds = array<i64: 1, 256, 128>}, {transform_indices = @transform_12, window_bounds = array<i64: 1, 1, 128>}, {transform_indices = @transform_13, window_bounds = array<i64: 1, 1, 128>}, {transform_indices = @transform_14, window_bounds = array<i64: 1, 1, 128>}, {transform_indices = @transform_15, window_bounds = array<i64: 1, 8, 128>}]} {
    %c0_i32 = arith.constant 0 : i32
    %0 = arith.cmpi eq, %arg1, %c0_i32 : i32
    %1 = arith.extui %0 : i1 to i32
    %c0_i32_0 = arith.constant 0 : i32
    %2 = arith.cmpi ne, %1, %c0_i32_0 : i32
    scf.if %2 {
      %c0_72 = arith.constant 0 : index
      %c0_73 = arith.constant 0 : index
      %c0_74 = arith.constant 0 : index
      %164 = vector.load %arg2[%c0_72, %c0_73, %c0_74] : memref<1x8x128xf32, #tpu.memory_space<vmem>>, vector<1x8x128xf32>
      %165 = arith.truncf %164 : vector<1x8x128xf32> to vector<1x8x128xbf16>
      %c0_75 = arith.constant 0 : index
      %c0_76 = arith.constant 0 : index
      %c0_77 = arith.constant 0 : index
      %166 = vector.load %arg18[%c0_75, %c0_76, %c0_77] : memref<1x8x128xbf16, #tpu.memory_space<vmem>>, vector<1x8x128xbf16>
      tpu.vector_store %arg18[%c0_75, %c0_76, %c0_77], %165 {strides = array<i32>} : memref<1x8x128xbf16, #tpu.memory_space<vmem>>, vector<1x8x128xbf16>,
    } else {
    }
    %c0 = arith.constant 0 : index
    %c0_1 = arith.constant 0 : index
    %c0_2 = arith.constant 0 : index
    %3 = vector.load %arg18[%c0, %c0_1, %c0_2] : memref<1x8x128xbf16, #tpu.memory_space<vmem>>, vector<1x8x128xbf16>
    %4 = arith.extf %3 : vector<1x8x128xbf16> to vector<1x8x128xf32>
    %5 = vector.shape_cast %4 : vector<1x8x128xf32> to vector<8x128xf32>
    %6 = arith.truncf %5 : vector<8x128xf32> to vector<8x128xbf16>
    %c0_3 = arith.constant 0 : index
    %c0_4 = arith.constant 0 : index
    %c0_5 = arith.constant 0 : index
    %7 = vector.load %arg3[%c0_3, %c0_4, %c0_5] : memref<1x8x1xf32, #tpu.memory_space<vmem>>, vector<1x8x1xf32>
    %8 = vector.shape_cast %7 : vector<1x8x1xf32> to vector<8x1xf32>
    %c0_6 = arith.constant 0 : index
    %c0_7 = arith.constant 0 : index
    %c0_8 = arith.constant 0 : index
    %9 = vector.load %arg4[%c0_6, %c0_7, %c0_8] : memref<1x1x8xf32, #tpu.memory_space<vmem>>, vector<1x1x8xf32>
    %c0_9 = arith.constant 0 : index
    %c0_10 = arith.constant 0 : index
    %c0_11 = arith.constant 0 : index
    %10 = vector.load %arg5[%c0_9, %c0_10, %c0_11] : memref<1x128x384xbf16, #tpu.memory_space<vmem>>, vector<1x128x384xbf16>
    %11 = vector.shape_cast %10 : vector<1x128x384xbf16> to vector<128x384xbf16>
    %cst = arith.constant dense<0.000000e+00> : vector<8x384xf32>
    %12 = tpu.matmul %6, %11, %cst {dimension_numbers = #tpu.dot_dimension_numbers<[1], [0], [0], [1], [0, 0, 1, 1], [], []>} : vector<8x128xbf16>, vector<128x384xbf16>, vector<8x384xf32> -> vector<8x384xf32>
    %c0_12 = arith.constant 0 : index
    %c0_13 = arith.constant 0 : index
    %c0_14 = arith.constant 0 : index
    %13 = vector.load %arg6[%c0_12, %c0_13, %c0_14] : memref<1x1x384xf32, #tpu.memory_space<vmem>>, vector<1x1x384xf32>
    %14 = vector.shape_cast %13 : vector<1x1x384xf32> to vector<1x384xf32>
    %15 = vector.broadcast %14 : vector<1x384xf32> to vector<8x384xf32>
    %16 = arith.addf %12, %15 : vector<8x384xf32>
    %17 = vector.extract_strided_slice %16 {offsets = [0, 0], sizes = [8, 128], strides = [1, 1]} : vector<8x384xf32> to vector<8x128xf32>
    %18 = arith.truncf %17 : vector<8x128xf32> to vector<8x128xbf16>
    %19 = vector.extract_strided_slice %16 {offsets = [0, 128], sizes = [8, 128], strides = [1, 1]} : vector<8x384xf32> to vector<8x128xf32>
    %20 = arith.truncf %19 : vector<8x128xf32> to vector<8x128xbf16>
    %21 = vector.extract_strided_slice %16 {offsets = [0, 256], sizes = [8, 128], strides = [1, 1]} : vector<8x384xf32> to vector<8x128xf32>
    %22 = arith.truncf %21 : vector<8x128xf32> to vector<8x128xbf16>
    %23 = vector.extract_strided_slice %18 {offsets = [0, 0], sizes = [8, 64], strides = [1, 1]} : vector<8x128xbf16> to vector<8x64xbf16>
    %24 = vector.shape_cast %23 : vector<8x64xbf16> to vector<1x8x64xbf16>
    %25 = vector.extract_strided_slice %20 {offsets = [0, 0], sizes = [8, 64], strides = [1, 1]} : vector<8x128xbf16> to vector<8x64xbf16>
    %26 = vector.shape_cast %25 : vector<8x64xbf16> to vector<1x8x64xbf16>
    %27 = vector.extract_strided_slice %22 {offsets = [0, 0], sizes = [8, 64], strides = [1, 1]} : vector<8x128xbf16> to vector<8x64xbf16>
    %28 = vector.shape_cast %27 : vector<8x64xbf16> to vector<1x8x64xbf16>
    "tpu.trace_start"() <{level = 10 : i32, message = "bqd,bkd->bqk"}> : () -> ()
    %cst_15 = arith.constant dense<0.000000e+00> : vector<1x8x8xf32>
    %29 = tpu.matmul %24, %26, %cst_15 {dimension_numbers = #tpu.dot_dimension_numbers<[2], [2], [1], [1], [0, 0, 0, 1, 1, 1], [0], [0]>} : vector<1x8x64xbf16>, vector<1x8x64xbf16>, vector<1x8x8xf32> -> vector<1x8x8xf32>
    "tpu.trace_stop"() : () -> ()
    %30 = vector.broadcast %9 : vector<1x1x8xf32> to vector<1x8x8xf32>
    %31 = arith.addf %29, %30 : vector<1x8x8xf32>
    %cst_16 = arith.constant dense<0xFF800000> : vector<1x8xf32>
    %32 = vector.multi_reduction <maximumf>, %31, %cst_16 [2] : vector<1x8x8xf32> to vector<1x8xf32>
    %33 = vector.shape_cast %32 : vector<1x8xf32> to vector<1x8x1xf32>
    %34 = vector.broadcast %33 : vector<1x8x1xf32> to vector<1x8x8xf32>
    %35 = arith.subf %31, %34 : vector<1x8x8xf32>
    %36 = math.exp %35 : vector<1x8x8xf32>
    %cst_17 = arith.constant dense<0.000000e+00> : vector<1x8xf32>
    %37 = vector.multi_reduction <add>, %36, %cst_17 [2] : vector<1x8x8xf32> to vector<1x8xf32>
    %38 = vector.shape_cast %37 : vector<1x8xf32> to vector<1x8x1xf32>
    %39 = tpu.reciprocal %38 {approx = true} : vector<1x8x1xf32> -> vector<1x8x1xf32>
    %40 = vector.broadcast %39 : vector<1x8x1xf32> to vector<1x8x8xf32>
    %41 = arith.mulf %36, %40 : vector<1x8x8xf32>
    %42 = arith.truncf %41 : vector<1x8x8xf32> to vector<1x8x8xbf16>
    "tpu.trace_start"() <{level = 10 : i32, message = "bqk,bkd->bqd"}> : () -> ()
    %cst_18 = arith.constant dense<0.000000e+00> : vector<1x8x64xf32>
    %43 = tpu.matmul %42, %28, %cst_18 {dimension_numbers = #tpu.dot_dimension_numbers<[2], [1], [1], [2], [0, 0, 0, 1, 1, 2], [0], [0]>} : vector<1x8x8xbf16>, vector<1x8x64xbf16>, vector<1x8x64xf32> -> vector<1x8x64xf32>
    "tpu.trace_stop"() : () -> ()
    %44 = vector.shape_cast %43 : vector<1x8x64xf32> to vector<8x64xf32>
    %45 = vector.extract_strided_slice %18 {offsets = [0, 64], sizes = [8, 64], strides = [1, 1]} : vector<8x128xbf16> to vector<8x64xbf16>
    %46 = vector.shape_cast %45 : vector<8x64xbf16> to vector<1x8x64xbf16>
    %47 = vector.extract_strided_slice %20 {offsets = [0, 64], sizes = [8, 64], strides = [1, 1]} : vector<8x128xbf16> to vector<8x64xbf16>
    %48 = vector.shape_cast %47 : vector<8x64xbf16> to vector<1x8x64xbf16>
    %49 = vector.extract_strided_slice %22 {offsets = [0, 64], sizes = [8, 64], strides = [1, 1]} : vector<8x128xbf16> to vector<8x64xbf16>
    %50 = vector.shape_cast %49 : vector<8x64xbf16> to vector<1x8x64xbf16>
    "tpu.trace_start"() <{level = 10 : i32, message = "bqd,bkd->bqk"}> : () -> ()
    %cst_19 = arith.constant dense<0.000000e+00> : vector<1x8x8xf32>
    %51 = tpu.matmul %46, %48, %cst_19 {dimension_numbers = #tpu.dot_dimension_numbers<[2], [2], [1], [1], [0, 0, 0, 1, 1, 1], [0], [0]>} : vector<1x8x64xbf16>, vector<1x8x64xbf16>, vector<1x8x8xf32> -> vector<1x8x8xf32>
    "tpu.trace_stop"() : () -> ()
    %52 = vector.broadcast %9 : vector<1x1x8xf32> to vector<1x8x8xf32>
    %53 = arith.addf %51, %52 : vector<1x8x8xf32>
    %cst_20 = arith.constant dense<0xFF800000> : vector<1x8xf32>
    %54 = vector.multi_reduction <maximumf>, %53, %cst_20 [2] : vector<1x8x8xf32> to vector<1x8xf32>
    %55 = vector.shape_cast %54 : vector<1x8xf32> to vector<1x8x1xf32>
    %56 = vector.broadcast %55 : vector<1x8x1xf32> to vector<1x8x8xf32>
    %57 = arith.subf %53, %56 : vector<1x8x8xf32>
    %58 = math.exp %57 : vector<1x8x8xf32>
    %cst_21 = arith.constant dense<0.000000e+00> : vector<1x8xf32>
    %59 = vector.multi_reduction <add>, %58, %cst_21 [2] : vector<1x8x8xf32> to vector<1x8xf32>
    %60 = vector.shape_cast %59 : vector<1x8xf32> to vector<1x8x1xf32>
    %61 = tpu.reciprocal %60 {approx = true} : vector<1x8x1xf32> -> vector<1x8x1xf32>
    %62 = vector.broadcast %61 : vector<1x8x1xf32> to vector<1x8x8xf32>
    %63 = arith.mulf %58, %62 : vector<1x8x8xf32>
    %64 = arith.truncf %63 : vector<1x8x8xf32> to vector<1x8x8xbf16>
    "tpu.trace_start"() <{level = 10 : i32, message = "bqk,bkd->bqd"}> : () -> ()
    %cst_22 = arith.constant dense<0.000000e+00> : vector<1x8x64xf32>
    %65 = tpu.matmul %64, %50, %cst_22 {dimension_numbers = #tpu.dot_dimension_numbers<[2], [1], [1], [2], [0, 0, 0, 1, 1, 2], [0], [0]>} : vector<1x8x8xbf16>, vector<1x8x64xbf16>, vector<1x8x64xf32> -> vector<1x8x64xf32>
    "tpu.trace_stop"() : () -> ()
    %66 = vector.shape_cast %65 : vector<1x8x64xf32> to vector<8x64xf32>
    %67 = tpu.concatenate %44, %66 in 1 : vector<8x64xf32>, vector<8x64xf32> -> vector<8x128xf32>
    %68 = arith.truncf %67 : vector<8x128xf32> to vector<8x128xbf16>
    %c0_23 = arith.constant 0 : index
    %c0_24 = arith.constant 0 : index
    %c0_25 = arith.constant 0 : index
    %69 = vector.load %arg8[%c0_23, %c0_24, %c0_25] : memref<1x1x128xf32, #tpu.memory_space<vmem>>, vector<1x1x128xf32>
    %70 = vector.shape_cast %69 : vector<1x1x128xf32> to vector<1x128xf32>
    %71 = vector.broadcast %70 : vector<1x128xf32> to vector<8x128xf32>
    %72 = arith.addf %5, %71 : vector<8x128xf32>
    %c0_26 = arith.constant 0 : index
    %c0_27 = arith.constant 0 : index
    %c0_28 = arith.constant 0 : index
    %73 = vector.load %arg7[%c0_26, %c0_27, %c0_28] : memref<1x128x128xbf16, #tpu.memory_space<vmem>>, vector<1x128x128xbf16>
    %74 = vector.shape_cast %73 : vector<1x128x128xbf16> to vector<128x128xbf16>
    %cst_29 = arith.constant dense<0.000000e+00> : vector<8x128xf32>
    %75 = tpu.matmul %68, %74, %cst_29 {dimension_numbers = #tpu.dot_dimension_numbers<[1], [0], [0], [1], [0, 0, 1, 1], [], []>} : vector<8x128xbf16>, vector<128x128xbf16>, vector<8x128xf32> -> vector<8x128xf32>
    %76 = arith.addf %72, %75 : vector<8x128xf32>
    %cst_30 = arith.constant dense<0.000000e+00> : vector<8xf32>
    %77 = vector.multi_reduction <add>, %76, %cst_30 [1] : vector<8x128xf32> to vector<8xf32>
    %78 = vector.shape_cast %77 : vector<8xf32> to vector<8x1xf32>
    %cst_31 = arith.constant 1.280000e+02 : f32
    %79 = vector.broadcast %cst_31 : f32 to vector<8x1xf32>
    %80 = arith.divf %78, %79 : vector<8x1xf32>
    %81 = vector.broadcast %80 : vector<8x1xf32> to vector<8x128xf32>
    %82 = arith.subf %76, %81 : vector<8x128xf32>
    %83 = vector.broadcast %80 : vector<8x1xf32> to vector<8x128xf32>
    %84 = arith.subf %76, %83 : vector<8x128xf32>
    %85 = arith.mulf %82, %84 : vector<8x128xf32>
    %cst_32 = arith.constant dense<0.000000e+00> : vector<8xf32>
    %86 = vector.multi_reduction <add>, %85, %cst_32 [1] : vector<8x128xf32> to vector<8xf32>
    %87 = vector.shape_cast %86 : vector<8xf32> to vector<8x1xf32>
    %cst_33 = arith.constant 1.280000e+02 : f32
    %88 = vector.broadcast %cst_33 : f32 to vector<8x1xf32>
    %89 = arith.divf %87, %88 : vector<8x1xf32>
    %90 = vector.broadcast %80 : vector<8x1xf32> to vector<8x128xf32>
    %91 = arith.subf %76, %90 : vector<8x128xf32>
    %cst_34 = arith.constant 9.99999974E-6 : f32
    %92 = vector.broadcast %cst_34 : f32 to vector<8x1xf32>
    %93 = arith.addf %89, %92 : vector<8x1xf32>
    %94 = math.rsqrt %93 : vector<8x1xf32>
    %95 = vector.broadcast %94 : vector<8x1xf32> to vector<8x128xf32>
    %96 = arith.mulf %91, %95 : vector<8x128xf32>
    %c0_35 = arith.constant 0 : index
    %c0_36 = arith.constant 0 : index
    %c0_37 = arith.constant 0 : index
    %97 = vector.load %arg9[%c0_35, %c0_36, %c0_37] : memref<1x1x128xf32, #tpu.memory_space<vmem>>, vector<1x1x128xf32>
    %98 = vector.shape_cast %97 : vector<1x1x128xf32> to vector<1x128xf32>
    %99 = vector.broadcast %98 : vector<1x128xf32> to vector<8x128xf32>
    %100 = arith.mulf %96, %99 : vector<8x128xf32>
    %c0_38 = arith.constant 0 : index
    %c0_39 = arith.constant 0 : index
    %c0_40 = arith.constant 0 : index
    %101 = vector.load %arg10[%c0_38, %c0_39, %c0_40] : memref<1x1x128xf32, #tpu.memory_space<vmem>>, vector<1x1x128xf32>
    %102 = vector.shape_cast %101 : vector<1x1x128xf32> to vector<1x128xf32>
    %103 = vector.broadcast %102 : vector<1x128xf32> to vector<8x128xf32>
    %104 = arith.addf %100, %103 : vector<8x128xf32>
    %105 = vector.broadcast %8 : vector<8x1xf32> to vector<8x128xf32>
    %106 = arith.mulf %104, %105 : vector<8x128xf32>
    %107 = arith.truncf %106 : vector<8x128xf32> to vector<8x128xbf16>
    %cst_41 = arith.constant 0.000000e+00 : f32
    %108 = vector.broadcast %cst_41 : f32 to vector<8x128xf32>
    %c0_42 = arith.constant 0 : index
    %c0_43 = arith.constant 0 : index
    %c0_44 = arith.constant 0 : index
    %109 = vector.load %arg11[%c0_42, %c0_43, %c0_44] : memref<1x128x256xbf16, #tpu.memory_space<vmem>>, vector<1x128x256xbf16>
    %110 = vector.shape_cast %109 : vector<1x128x256xbf16> to vector<128x256xbf16>
    %cst_45 = arith.constant dense<0.000000e+00> : vector<8x256xf32>
    %111 = tpu.matmul %107, %110, %cst_45 {dimension_numbers = #tpu.dot_dimension_numbers<[1], [0], [0], [1], [0, 0, 1, 1], [], []>} : vector<8x128xbf16>, vector<128x256xbf16>, vector<8x256xf32> -> vector<8x256xf32>
    %c0_46 = arith.constant 0 : index
    %c0_47 = arith.constant 0 : index
    %c0_48 = arith.constant 0 : index
    %112 = vector.load %arg12[%c0_46, %c0_47, %c0_48] : memref<1x1x256xf32, #tpu.memory_space<vmem>>, vector<1x1x256xf32>
    %113 = vector.shape_cast %112 : vector<1x1x256xf32> to vector<1x256xf32>
    %114 = vector.broadcast %113 : vector<1x256xf32> to vector<8x256xf32>
    %115 = arith.addf %111, %114 : vector<8x256xf32>
    %cst_49 = arith.constant 0.000000e+00 : f32
    %116 = vector.broadcast %cst_49 : f32 to vector<8x256xf32>
    %117 = arith.maximumf %115, %116 : vector<8x256xf32>
    %118 = arith.truncf %117 : vector<8x256xf32> to vector<8x256xbf16>
    %c0_50 = arith.constant 0 : index
    %c0_51 = arith.constant 0 : index
    %c0_52 = arith.constant 0 : index
    %119 = vector.load %arg13[%c0_50, %c0_51, %c0_52] : memref<1x256x128xbf16, #tpu.memory_space<vmem>>, vector<1x256x128xbf16>
    %120 = vector.shape_cast %119 : vector<1x256x128xbf16> to vector<256x128xbf16>
    %cst_53 = arith.constant dense<0.000000e+00> : vector<8x128xf32>
    %121 = tpu.matmul %118, %120, %cst_53 {dimension_numbers = #tpu.dot_dimension_numbers<[1], [0], [0], [1], [0, 0, 1, 1], [], []>} : vector<8x256xbf16>, vector<256x128xbf16>, vector<8x128xf32> -> vector<8x128xf32>
    %122 = arith.addf %108, %121 : vector<8x128xf32>
    %c0_54 = arith.constant 0 : index
    %c0_55 = arith.constant 0 : index
    %c0_56 = arith.constant 0 : index
    %123 = vector.load %arg14[%c0_54, %c0_55, %c0_56] : memref<1x1x128xf32, #tpu.memory_space<vmem>>, vector<1x1x128xf32>
    %124 = vector.shape_cast %123 : vector<1x1x128xf32> to vector<1x128xf32>
    %125 = vector.broadcast %124 : vector<1x128xf32> to vector<8x128xf32>
    %126 = arith.addf %122, %125 : vector<8x128xf32>
    %127 = arith.addf %126, %106 : vector<8x128xf32>
    %cst_57 = arith.constant dense<0.000000e+00> : vector<8xf32>
    %128 = vector.multi_reduction <add>, %127, %cst_57 [1] : vector<8x128xf32> to vector<8xf32>
    %129 = vector.shape_cast %128 : vector<8xf32> to vector<8x1xf32>
    %cst_58 = arith.constant 1.280000e+02 : f32
    %130 = vector.broadcast %cst_58 : f32 to vector<8x1xf32>
    %131 = arith.divf %129, %130 : vector<8x1xf32>
    %132 = vector.broadcast %131 : vector<8x1xf32> to vector<8x128xf32>
    %133 = arith.subf %127, %132 : vector<8x128xf32>
    %134 = vector.broadcast %131 : vector<8x1xf32> to vector<8x128xf32>
    %135 = arith.subf %127, %134 : vector<8x128xf32>
    %136 = arith.mulf %133, %135 : vector<8x128xf32>
    %cst_59 = arith.constant dense<0.000000e+00> : vector<8xf32>
    %137 = vector.multi_reduction <add>, %136, %cst_59 [1] : vector<8x128xf32> to vector<8xf32>
    %138 = vector.shape_cast %137 : vector<8xf32> to vector<8x1xf32>
    %cst_60 = arith.constant 1.280000e+02 : f32
    %139 = vector.broadcast %cst_60 : f32 to vector<8x1xf32>
    %140 = arith.divf %138, %139 : vector<8x1xf32>
    %141 = vector.broadcast %131 : vector<8x1xf32> to vector<8x128xf32>
    %142 = arith.subf %127, %141 : vector<8x128xf32>
    %cst_61 = arith.constant 9.99999974E-6 : f32
    %143 = vector.broadcast %cst_61 : f32 to vector<8x1xf32>
    %144 = arith.addf %140, %143 : vector<8x1xf32>
    %145 = math.rsqrt %144 : vector<8x1xf32>
    %146 = vector.broadcast %145 : vector<8x1xf32> to vector<8x128xf32>
    %147 = arith.mulf %142, %146 : vector<8x128xf32>
    %c0_62 = arith.constant 0 : index
    %c0_63 = arith.constant 0 : index
    %c0_64 = arith.constant 0 : index
    %148 = vector.load %arg15[%c0_62, %c0_63, %c0_64] : memref<1x1x128xf32, #tpu.memory_space<vmem>>, vector<1x1x128xf32>
    %149 = vector.shape_cast %148 : vector<1x1x128xf32> to vector<1x128xf32>
    %150 = vector.broadcast %149 : vector<1x128xf32> to vector<8x128xf32>
    %151 = arith.mulf %147, %150 : vector<8x128xf32>
    %c0_65 = arith.constant 0 : index
    %c0_66 = arith.constant 0 : index
    %c0_67 = arith.constant 0 : index
    %152 = vector.load %arg16[%c0_65, %c0_66, %c0_67] : memref<1x1x128xf32, #tpu.memory_space<vmem>>, vector<1x1x128xf32>
    %153 = vector.shape_cast %152 : vector<1x1x128xf32> to vector<1x128xf32>
    %154 = vector.broadcast %153 : vector<1x128xf32> to vector<8x128xf32>
    %155 = arith.addf %151, %154 : vector<8x128xf32>
    %156 = vector.broadcast %8 : vector<8x1xf32> to vector<8x128xf32>
    %157 = arith.mulf %155, %156 : vector<8x128xf32>
    %158 = vector.shape_cast %157 : vector<8x128xf32> to vector<1x8x128xf32>
    %159 = arith.truncf %158 : vector<1x8x128xf32> to vector<1x8x128xbf16>
    %c0_68 = arith.constant 0 : index
    %c0_69 = arith.constant 0 : index
    %c0_70 = arith.constant 0 : index
    %160 = vector.load %arg18[%c0_68, %c0_69, %c0_70] : memref<1x8x128xbf16, #tpu.memory_space<vmem>>, vector<1x8x128xbf16>
    tpu.vector_store %arg18[%c0_68, %c0_69, %c0_70], %159 {strides = array<i32>} : memref<1x8x128xbf16, #tpu.memory_space<vmem>>, vector<1x8x128xbf16>,
    %c1_i32 = arith.constant 1 : i32
    %161 = arith.cmpi eq, %arg1, %c1_i32 : i32
    %162 = arith.extui %161 : i1 to i32
    %c0_i32_71 = arith.constant 0 : i32
    %163 = arith.cmpi ne, %162, %c0_i32_71 : i32
    scf.if %163 {
      %c0_72 = arith.constant 0 : index
      %c0_73 = arith.constant 0 : index
      %c0_74 = arith.constant 0 : index
      %164 = vector.load %arg17[%c0_72, %c0_73, %c0_74] : memref<1x8x128xf32, #tpu.memory_space<vmem>>, vector<1x8x128xf32>
      tpu.vector_store %arg17[%c0_72, %c0_73, %c0_74], %158 {strides = array<i32>} : memref<1x8x128xf32, #tpu.memory_space<vmem>>, vector<1x8x128xf32>,
    } else {
    }
    return
  }
  func.func @transform_0(%arg0: i32, %arg1: i32) -> (i32, i32, i32) {
    %c0_i32 = arith.constant 0 : i32
    %c0_i32_0 = arith.constant 0 : i32
    %c0_i32_1 = arith.constant 0 : i32
    return %arg0, %c0_i32, %c0_i32_0 : i32, i32, i32
  }
  func.func @transform_1(%arg0: i32, %arg1: i32) -> (i32, i32, i32) {
    %c0_i32 = arith.constant 0 : i32
    %c0_i32_0 = arith.constant 0 : i32
    %c0_i32_1 = arith.constant 0 : i32
    return %arg0, %c0_i32, %c0_i32_0 : i32, i32, i32
  }
  func.func @transform_2(%arg0: i32, %arg1: i32) -> (i32, i32, i32) {
    %c0_i32 = arith.constant 0 : i32
    %c0_i32_0 = arith.constant 0 : i32
    %c0_i32_1 = arith.constant 0 : i32
    return %arg0, %c0_i32, %c0_i32_0 : i32, i32, i32
  }
  func.func @transform_3(%arg0: i32, %arg1: i32) -> (i32, i32, i32) {
    %c0_i32 = arith.constant 0 : i32
    %c0_i32_0 = arith.constant 0 : i32
    %c0_i32_1 = arith.constant 0 : i32
    return %arg1, %c0_i32, %c0_i32_0 : i32, i32, i32
  }
  func.func @transform_4(%arg0: i32, %arg1: i32) -> (i32, i32, i32) {
    %c0_i32 = arith.constant 0 : i32
    %c0_i32_0 = arith.constant 0 : i32
    %c0_i32_1 = arith.constant 0 : i32
    return %arg1, %c0_i32, %c0_i32_0 : i32, i32, i32
  }
  func.func @transform_5(%arg0: i32, %arg1: i32) -> (i32, i32, i32) {
    %c0_i32 = arith.constant 0 : i32
    %c0_i32_0 = arith.constant 0 : i32
    %c0_i32_1 = arith.constant 0 : i32
    return %arg1, %c0_i32, %c0_i32_0 : i32, i32, i32
  }
  func.func @transform_6(%arg0: i32, %arg1: i32) -> (i32, i32, i32) {
    %c0_i32 = arith.constant 0 : i32
    %c0_i32_0 = arith.constant 0 : i32
    %c0_i32_1 = arith.constant 0 : i32
    return %arg1, %c0_i32, %c0_i32_0 : i32, i32, i32
  }
  func.func @transform_7(%arg0: i32, %arg1: i32) -> (i32, i32, i32) {
    %c0_i32 = arith.constant 0 : i32
    %c0_i32_0 = arith.constant 0 : i32
    %c0_i32_1 = arith.constant 0 : i32
    return %arg1, %c0_i32, %c0_i32_0 : i32, i32, i32
  }
  func.func @transform_8(%arg0: i32, %arg1: i32) -> (i32, i32, i32) {
    %c0_i32 = arith.constant 0 : i32
    %c0_i32_0 = arith.constant 0 : i32
    %c0_i32_1 = arith.constant 0 : i32
    return %arg1, %c0_i32, %c0_i32_0 : i32, i32, i32
  }
  func.func @transform_9(%arg0: i32, %arg1: i32) -> (i32, i32, i32) {
    %c0_i32 = arith.constant 0 : i32
    %c0_i32_0 = arith.constant 0 : i32
    %c0_i32_1 = arith.constant 0 : i32
    return %arg1, %c0_i32, %c0_i32_0 : i32, i32, i32
  }
  func.func @transform_10(%arg0: i32, %arg1: i32) -> (i32, i32, i32) {
    %c0_i32 = arith.constant 0 : i32
    %c0_i32_0 = arith.constant 0 : i32
    %c0_i32_1 = arith.constant 0 : i32
    return %arg1, %c0_i32, %c0_i32_0 : i32, i32, i32
  }
  func.func @transform_11(%arg0: i32, %arg1: i32) -> (i32, i32, i32) {
    %c0_i32 = arith.constant 0 : i32
    %c0_i32_0 = arith.constant 0 : i32
    %c0_i32_1 = arith.constant 0 : i32
    return %arg1, %c0_i32, %c0_i32_0 : i32, i32, i32
  }
  func.func @transform_12(%arg0: i32, %arg1: i32) -> (i32, i32, i32) {
    %c0_i32 = arith.constant 0 : i32
    %c0_i32_0 = arith.constant 0 : i32
    %c0_i32_1 = arith.constant 0 : i32
    return %arg1, %c0_i32, %c0_i32_0 : i32, i32, i32
  }
  func.func @transform_13(%arg0: i32, %arg1: i32) -> (i32, i32, i32) {
    %c0_i32 = arith.constant 0 : i32
    %c0_i32_0 = arith.constant 0 : i32
    %c0_i32_1 = arith.constant 0 : i32
    return %arg1, %c0_i32, %c0_i32_0 : i32, i32, i32
  }
  func.func @transform_14(%arg0: i32, %arg1: i32) -> (i32, i32, i32) {
    %c0_i32 = arith.constant 0 : i32
    %c0_i32_0 = arith.constant 0 : i32
    %c0_i32_1 = arith.constant 0 : i32
    return %arg1, %c0_i32, %c0_i32_0 : i32, i32, i32
  }
  func.func @transform_15(%arg0: i32, %arg1: i32) -> (i32, i32, i32) {
    %c0_i32 = arith.constant 0 : i32
    %c0_i32_0 = arith.constant 0 : i32
    %c0_i32_1 = arith.constant 0 : i32
    return %arg0, %c0_i32, %c0_i32_0 : i32, i32, i32
  }
}

</mosaic_0001>

<llo_original>
// kernel: tpu_custom_call.1
$region0: #{tpu_custom_call.1}
  #allocation0 [shape = 'u32[]', space=smem, size = 0x4, offset = 0x4, fixed_abs, tag = 'smem constant byte address 0x4 - core index']
  #allocation1 [shape = 'u32[144,128]{1,0:T(1,128)}', space=vmem, size = 0x12000, scoped, tag = 'internal scratch']
  #allocation2 [shape = 'bf16[1,8,128]{2,1,0:T(8,128)(2,1)}', space=vmem, size = 0x800, scoped, tag = 'scratch operand']
  %s0 = inlined_call_operand.vmem [shape: f32[2,8,128], index: 0, kind: input, shape index: {}]
  %s1 = inlined_call_operand.vmem [shape: f32[2,8,1], index: 1, kind: input, shape index: {}]
  %s2 = inlined_call_operand.vmem [shape: f32[2,1,8], index: 2, kind: input, shape index: {}]
  %s3 = inlined_call_operand.hbm [shape: bf16[2,128,384], index: 3, kind: input, shape index: {}]
  %s4 = inlined_call_operand.vmem [shape: f32[2,1,384], index: 4, kind: input, shape index: {}]
  %s5 = inlined_call_operand.hbm [shape: bf16[2,128,128], index: 5, kind: input, shape index: {}]
  %s6 = inlined_call_operand.vmem [shape: f32[2,1,128], index: 6, kind: input, shape index: {}]
  %s7 = inlined_call_operand.vmem [shape: f32[2,1,128], index: 7, kind: input, shape index: {}]
  %s8 = inlined_call_operand.vmem [shape: f32[2,1,128], index: 8, kind: input, shape index: {}]
  %s9 = inlined_call_operand.hbm [shape: bf16[2,128,256], index: 9, kind: input, shape index: {}]
  %s10 = inlined_call_operand.vmem [shape: f32[2,1,256], index: 10, kind: input, shape index: {}]
  %s11 = inlined_call_operand.hbm [shape: bf16[2,256,128], index: 11, kind: input, shape index: {}]
  %s12 = inlined_call_operand.vmem [shape: f32[2,1,128], index: 12, kind: input, shape index: {}]
  %s13 = inlined_call_operand.vmem [shape: f32[2,1,128], index: 13, kind: input, shape index: {}]
  %s14 = inlined_call_operand.vmem [shape: f32[2,1,128], index: 14, kind: input, shape index: {}]
  %s15 = inlined_call_operand.hbm [shape: f32[2,8,128], index: 15, kind: output, shape index: {}]
  %s16 = sld [smem:[#allocation0]]
  $region117: #{tpu_custom_call.1} parent=0
    _
  %s18 = ssub.s32 1, %s16
  %s19 = scalar_select 0, %s18, %s16
  $region1: #{tpu_custom_call.1} parent=0
    #allocation3 [shape = 'u8[196608]{0}', space=vmem, size = 0x30000, scoped, tag = 'input window, operand 3']
    #allocation4 [shape = 's32[2]{0}', space=sflag, size = 0x8, scoped, tag = 'scoped memory for tpu_custom_call.1']
    #allocation5 [shape = 's32[2]{0}', space=sflag, size = 0x8, scoped, tag = 'scoped memory for tpu_custom_call.1']
    #allocation6 [shape = 'u8[65536]{0}', space=vmem, size = 0x10000, scoped, tag = 'input window, operand 5']
    #allocation7 [shape = 's32[2]{0}', space=sflag, size = 0x8, scoped, tag = 'scoped memory for tpu_custom_call.1']
    #allocation8 [shape = 'u8[131072]{0}', space=vmem, size = 0x20000, scoped, tag = 'input window, operand 9']
    #allocation9 [shape = 'u8[131072]{0}', space=vmem, size = 0x20000, scoped, tag = 'input window, operand 11']
    #allocation10 [shape = 's32[2]{0}', space=sflag, size = 0x8, scoped, tag = 'scoped memory for tpu_custom_call.1']
    #allocation11 [shape = 'u8[8192]{0}', space=vmem, size = 0x2000, scoped, tag = 'output window, operand 0']
    %20 = vsyncpa [#allocation4], 0
    %s21 = scalar_lea.sflag [#allocation4], 1
    %22 = vsyncpa %s21, 0
    %23 = vsyncpa [#allocation7], 0
    %s24 = scalar_lea.sflag [#allocation7], 1
    %25 = vsyncpa %s24, 0
    %26 = vsyncpa [#allocation10], 0
    %s27 = scalar_lea.sflag [#allocation10], 1
    %28 = vsyncpa %s27, 0
    %29 = vsyncpa [#allocation5], 0
    %s30 = scalar_lea.sflag [#allocation5], 1
    %31 = vsyncpa %s30, 0
    loop: start=0, step=1, limit=6
    $region2: #{tpu_custom_call.1} parent=1 // loop_pre_header
      _
    $region3: #{tpu_custom_call.1} parent=1 // loop_header
      %s33 = sphi 0, %s37
      %p34 = scmp.ge.s32.totalorder %s33, 6
      %s40 = sphi 0, %s52
      %s41 = sphi 0, %s48
      %s42 = sphi 0, %s40
      %s43 = sphi 0, %s41
      %s44 = sphi 0, %s42
      %s45 = sphi 0, %s43
      %s55 = sphi 0, %s57
      %s58 = sphi 0, %s55
      %s59 = sphi 0, %s58
      %s75 = sphi 0, %s59
      %s81 = sphi 0, %s83
      %s84 = sphi 0, %s81
      %s85 = sphi 0, %s84
      %s101 = sphi 0, %s85
      %s107 = sphi 0, %s109
      %s110 = sphi 0, %s107
      %s111 = sphi 0, %s110
      %s127 = sphi 0, %s111
      %s133 = sphi 0, %s135
      %s136 = sphi 0, %s133
      %s137 = sphi 0, %s136
      %s153 = sphi 0, %s137
      %s159 = sphi 0, %s161
      %s162 = sphi 0, %s159
      %s163 = sphi 0, %s162
      %s179 = sphi 0, %s163
      %s185 = sphi 0, %s187
      %s188 = sphi 0, %s185
      %s189 = sphi 0, %s188
      %s205 = sphi 0, %s189
      %s211 = sphi 0, %s213
      %s214 = sphi 0, %s211
      %s215 = sphi 0, %s214
      %s231 = sphi 0, %s215
      %s237 = sphi 0, %s239
      %s240 = sphi 0, %s237
      %s241 = sphi 0, %s240
      %s257 = sphi 0, %s241
      %s263 = sphi 0, %s265
      %s266 = sphi 0, %s263
      %s267 = sphi 0, %s266
      %s283 = sphi 0, %s267
      %s289 = sphi 0, %s291
      %s292 = sphi 0, %s289
      %s293 = sphi 0, %s292
      %s309 = sphi 0, %s293
      %s315 = sphi 0, %s317
      %s318 = sphi 0, %s315
      %s319 = sphi 0, %s318
      %s335 = sphi 0, %s319
      %s341 = sphi 0, %s343
      %s344 = sphi 0, %s341
      %s345 = sphi 0, %s344
      %s361 = sphi 0, %s345
      %s367 = sphi 0, %s369
      %s370 = sphi 0, %s367
      %s371 = sphi 0, %s370
      %s387 = sphi 0, %s371
      %s393 = sphi 0, %s395
      %s396 = sphi 0, %s393
      %s397 = sphi 0, %s396
      %s413 = sphi 0, %s397
      %s419 = sphi 0, %s421
      %s422 = sphi 0, %s419
      %s423 = sphi 0, %s422
      %s439 = sphi 0, %s423
      %s445 = sphi 0, %s447
      %s448 = sphi 0, %s445
      %s449 = sphi 0, %s448
      %s465 = sphi 0, %s449
    $region4: #{tpu_custom_call.1} parent=1 // loop_header_branch
      %36 = sbr.rel (%p34) target = $region8
    $region5: #{tpu_custom_call.1} parent=1 // loop_body
      %s38 = ssub.s32 %s33, 1
      %s39 = ssub.s32 %s33, 2
      %s46 = sadd.s32 1, %s41
      %p47 = scmp.ge.s32.totalorder %s46, 2
      %s48 = scalar_select %p47, 0, %s46
      %s49 = sadd.s32 1, %s40
      %s50 = scalar_select %p47, %s49, %s40
      %p51 = scmp.ge.s32.totalorder %s50, 2
      %s52 = scalar_select %p51, 0, %s50
      %s53 = ssub.s32 %s40, %s52
      %p54 = scmp.eq.s32.totalorder %s53, 0
      %s56 = sadd.s32 %s55, 1
      %s57 = scalar_select %p54, %s55, %s56
      %p60 = pneg %p54
      %p61 = scmp.eq.s32.totalorder %s33, 3
      %p62 = por %p60, %p61
      %p63 = scmp.ne.s32.totalorder %s55, %s58
      %p64 = scmp.eq.s32.totalorder %s33, 0
      %p65 = por %p63, %p64
      %p66 = scmp.ne.s32.totalorder %s55, %s58
      %p67 = scmp.eq.s32.totalorder %s38, 3
      %p68 = por %p66, %p67
      %p69 = scmp.ne.s32.totalorder %s58, %s59
      %p70 = scmp.eq.s32.totalorder %s38, 0
      %p71 = por %p69, %p70
      %p72 = scmp.ne.s32.totalorder %s58, %s59
      %p73 = scmp.eq.s32.totalorder %s39, 3
      %p74 = por %p72, %p73
      %p76 = scmp.ne.s32.totalorder %s59, %s75
      %p77 = scmp.eq.s32.totalorder %s39, 0
      %p78 = por %p76, %p77
      %s79 = ssub.s32 %s40, %s52
      %p80 = scmp.eq.s32.totalorder %s79, 0
      %s82 = sadd.s32 %s81, 1
      %s83 = scalar_select %p80, %s81, %s82
      %p86 = pneg %p80
      %p87 = scmp.eq.s32.totalorder %s33, 3
      %p88 = por %p86, %p87
      %p89 = scmp.ne.s32.totalorder %s81, %s84
      %p90 = scmp.eq.s32.totalorder %s33, 0
      %p91 = por %p89, %p90
      %p92 = scmp.ne.s32.totalorder %s81, %s84
      %p93 = scmp.eq.s32.totalorder %s38, 3
      %p94 = por %p92, %p93
      %p95 = scmp.ne.s32.totalorder %s84, %s85
      %p96 = scmp.eq.s32.totalorder %s38, 0
      %p97 = por %p95, %p96
      %p98 = scmp.ne.s32.totalorder %s84, %s85
      %p99 = scmp.eq.s32.totalorder %s39, 3
      %p100 = por %p98, %p99
      %p102 = scmp.ne.s32.totalorder %s85, %s101
      %p103 = scmp.eq.s32.totalorder %s39, 0
      %p104 = por %p102, %p103
      %s105 = ssub.s32 %s40, %s52
      %p106 = scmp.eq.s32.totalorder %s105, 0
      %s108 = sadd.s32 %s107, 1
      %s109 = scalar_select %p106, %s107, %s108
      %p112 = pneg %p106
      %p113 = scmp.eq.s32.totalorder %s33, 3
      %p114 = por %p112, %p113
      %p115 = scmp.ne.s32.totalorder %s107, %s110
      %p116 = scmp.eq.s32.totalorder %s33, 0
      %p117 = por %p115, %p116
      %p118 = scmp.ne.s32.totalorder %s107, %s110
      %p119 = scmp.eq.s32.totalorder %s38, 3
      %p120 = por %p118, %p119
      %p121 = scmp.ne.s32.totalorder %s110, %s111
      %p122 = scmp.eq.s32.totalorder %s38, 0
      %p123 = por %p121, %p122
      %p124 = scmp.ne.s32.totalorder %s110, %s111
      %p125 = scmp.eq.s32.totalorder %s39, 3
      %p126 = por %p124, %p125
      %p128 = scmp.ne.s32.totalorder %s111, %s127
      %p129 = scmp.eq.s32.totalorder %s39, 0
      %p130 = por %p128, %p129
      %s131 = ssub.s32 %s41, %s48
      %p132 = scmp.eq.s32.totalorder %s131, 0
      %s134 = sadd.s32 %s133, 1
      %s135 = scalar_select %p132, %s133, %s134
      %p138 = pneg %p132
      %p139 = scmp.eq.s32.totalorder %s33, 3
      %p140 = por %p138, %p139
      %p141 = scmp.ne.s32.totalorder %s133, %s136
      %p142 = scmp.eq.s32.totalorder %s33, 0
      %p143 = por %p141, %p142
      %p144 = scmp.ne.s32.totalorder %s133, %s136
      %p145 = scmp.eq.s32.totalorder %s38, 3
      %p146 = por %p144, %p145
      %p147 = scmp.ne.s32.totalorder %s136, %s137
      %p148 = scmp.eq.s32.totalorder %s38, 0
      %p149 = por %p147, %p148
      %p150 = scmp.ne.s32.totalorder %s136, %s137
      %p151 = scmp.eq.s32.totalorder %s39, 3
      %p152 = por %p150, %p151
      %p154 = scmp.ne.s32.totalorder %s137, %s153
      %p155 = scmp.eq.s32.totalorder %s39, 0
      %p156 = por %p154, %p155
      %s157 = ssub.s32 %s41, %s48
      %p158 = scmp.eq.s32.totalorder %s157, 0
      %s160 = sadd.s32 %s159, 1
      %s161 = scalar_select %p158, %s159, %s160
      %p164 = pneg %p158
      %p165 = scmp.eq.s32.totalorder %s33, 3
      %p166 = por %p164, %p165
      %p167 = scmp.ne.s32.totalorder %s159, %s162
      %p168 = scmp.eq.s32.totalorder %s33, 0
      %p169 = por %p167, %p168
      %p170 = scmp.ne.s32.totalorder %s159, %s162
      %p171 = scmp.eq.s32.totalorder %s38, 3
      %p172 = por %p170, %p171
      %p173 = scmp.ne.s32.totalorder %s162, %s163
      %p174 = scmp.eq.s32.totalorder %s38, 0
      %p175 = por %p173, %p174
      %p176 = scmp.ne.s32.totalorder %s162, %s163
      %p177 = scmp.eq.s32.totalorder %s39, 3
      %p178 = por %p176, %p177
      %p180 = scmp.ne.s32.totalorder %s163, %s179
      %p181 = scmp.eq.s32.totalorder %s39, 0
      %p182 = por %p180, %p181
      %s183 = ssub.s32 %s41, %s48
      %p184 = scmp.eq.s32.totalorder %s183, 0
      %s186 = sadd.s32 %s185, 1
      %s187 = scalar_select %p184, %s185, %s186
      %p190 = pneg %p184
      %p191 = scmp.eq.s32.totalorder %s33, 3
      %p192 = por %p190, %p191
      %p193 = scmp.ne.s32.totalorder %s185, %s188
      %p194 = scmp.eq.s32.totalorder %s33, 0
      %p195 = por %p193, %p194
      %p196 = scmp.ne.s32.totalorder %s185, %s188
      %p197 = scmp.eq.s32.totalorder %s38, 3
      %p198 = por %p196, %p197
      %p199 = scmp.ne.s32.totalorder %s188, %s189
      %p200 = scmp.eq.s32.totalorder %s38, 0
      %p201 = por %p199, %p200
      %p202 = scmp.ne.s32.totalorder %s188, %s189
      %p203 = scmp.eq.s32.totalorder %s39, 3
      %p204 = por %p202, %p203
      %p206 = scmp.ne.s32.totalorder %s189, %s205
      %p207 = scmp.eq.s32.totalorder %s39, 0
      %p208 = por %p206, %p207
      %s209 = ssub.s32 %s41, %s48
      %p210 = scmp.eq.s32.totalorder %s209, 0
      %s212 = sadd.s32 %s211, 1
      %s213 = scalar_select %p210, %s211, %s212
      %p216 = pneg %p210
      %p217 = scmp.eq.s32.totalorder %s33, 3
      %p218 = por %p216, %p217
      %p219 = scmp.ne.s32.totalorder %s211, %s214
      %p220 = scmp.eq.s32.totalorder %s33, 0
      %p221 = por %p219, %p220
      %p222 = scmp.ne.s32.totalorder %s211, %s214
      %p223 = scmp.eq.s32.totalorder %s38, 3
      %p224 = por %p222, %p223
      %p225 = scmp.ne.s32.totalorder %s214, %s215
      %p226 = scmp.eq.s32.totalorder %s38, 0
      %p227 = por %p225, %p226
      %p228 = scmp.ne.s32.totalorder %s214, %s215
      %p229 = scmp.eq.s32.totalorder %s39, 3
      %p230 = por %p228, %p229
      %p232 = scmp.ne.s32.totalorder %s215, %s231
      %p233 = scmp.eq.s32.totalorder %s39, 0
      %p234 = por %p232, %p233
      %s235 = ssub.s32 %s41, %s48
      %p236 = scmp.eq.s32.totalorder %s235, 0
      %s238 = sadd.s32 %s237, 1
      %s239 = scalar_select %p236, %s237, %s238
      %p242 = pneg %p236
      %p243 = scmp.eq.s32.totalorder %s33, 3
      %p244 = por %p242, %p243
      %p245 = scmp.ne.s32.totalorder %s237, %s240
      %p246 = scmp.eq.s32.totalorder %s33, 0
      %p247 = por %p245, %p246
      %p248 = scmp.ne.s32.totalorder %s237, %s240
      %p249 = scmp.eq.s32.totalorder %s38, 3
      %p250 = por %p248, %p249
      %p251 = scmp.ne.s32.totalorder %s240, %s241
      %p252 = scmp.eq.s32.totalorder %s38, 0
      %p253 = por %p251, %p252
      %p254 = scmp.ne.s32.totalorder %s240, %s241
      %p255 = scmp.eq.s32.totalorder %s39, 3
      %p256 = por %p254, %p255
      %p258 = scmp.ne.s32.totalorder %s241, %s257
      %p259 = scmp.eq.s32.totalorder %s39, 0
      %p260 = por %p258, %p259
      %s261 = ssub.s32 %s41, %s48
      %p262 = scmp.eq.s32.totalorder %s261, 0
      %s264 = sadd.s32 %s263, 1
      %s265 = scalar_select %p262, %s263, %s264
      %p268 = pneg %p262
      %p269 = scmp.eq.s32.totalorder %s33, 3
      %p270 = por %p268, %p269
      %p271 = scmp.ne.s32.totalorder %s263, %s266
      %p272 = scmp.eq.s32.totalorder %s33, 0
      %p273 = por %p271, %p272
      %p274 = scmp.ne.s32.totalorder %s263, %s266
      %p275 = scmp.eq.s32.totalorder %s38, 3
      %p276 = por %p274, %p275
      %p277 = scmp.ne.s32.totalorder %s266, %s267
      %p278 = scmp.eq.s32.totalorder %s38, 0
      %p279 = por %p277, %p278
      %p280 = scmp.ne.s32.totalorder %s266, %s267
      %p281 = scmp.eq.s32.totalorder %s39, 3
      %p282 = por %p280, %p281
      %p284 = scmp.ne.s32.totalorder %s267, %s283
      %p285 = scmp.eq.s32.totalorder %s39, 0
      %p286 = por %p284, %p285
      %s287 = ssub.s32 %s41, %s48
      %p288 = scmp.eq.s32.totalorder %s287, 0
      %s290 = sadd.s32 %s289, 1
      %s291 = scalar_select %p288, %s289, %s290
      %p294 = pneg %p288
      %p295 = scmp.eq.s32.totalorder %s33, 3
      %p296 = por %p294, %p295
      %p297 = scmp.ne.s32.totalorder %s289, %s292
      %p298 = scmp.eq.s32.totalorder %s33, 0
      %p299 = por %p297, %p298
      %p300 = scmp.ne.s32.totalorder %s289, %s292
      %p301 = scmp.eq.s32.totalorder %s38, 3
      %p302 = por %p300, %p301
      %p303 = scmp.ne.s32.totalorder %s292, %s293
      %p304 = scmp.eq.s32.totalorder %s38, 0
      %p305 = por %p303, %p304
      %p306 = scmp.ne.s32.totalorder %s292, %s293
      %p307 = scmp.eq.s32.totalorder %s39, 3
      %p308 = por %p306, %p307
      %p310 = scmp.ne.s32.totalorder %s293, %s309
      %p311 = scmp.eq.s32.totalorder %s39, 0
      %p312 = por %p310, %p311
      %s313 = ssub.s32 %s41, %s48
      %p314 = scmp.eq.s32.totalorder %s313, 0
      %s316 = sadd.s32 %s315, 1
      %s317 = scalar_select %p314, %s315, %s316
      %p320 = pneg %p314
      %p321 = scmp.eq.s32.totalorder %s33, 3
      %p322 = por %p320, %p321
      %p323 = scmp.ne.s32.totalorder %s315, %s318
      %p324 = scmp.eq.s32.totalorder %s33, 0
      %p325 = por %p323, %p324
      %p326 = scmp.ne.s32.totalorder %s315, %s318
      %p327 = scmp.eq.s32.totalorder %s38, 3
      %p328 = por %p326, %p327
      %p329 = scmp.ne.s32.totalorder %s318, %s319
      %p330 = scmp.eq.s32.totalorder %s38, 0
      %p331 = por %p329, %p330
      %p332 = scmp.ne.s32.totalorder %s318, %s319
      %p333 = scmp.eq.s32.totalorder %s39, 3
      %p334 = por %p332, %p333
      %p336 = scmp.ne.s32.totalorder %s319, %s335
      %p337 = scmp.eq.s32.totalorder %s39, 0
      %p338 = por %p336, %p337
      %s339 = ssub.s32 %s41, %s48
      %p340 = scmp.eq.s32.totalorder %s339, 0
      %s342 = sadd.s32 %s341, 1
      %s343 = scalar_select %p340, %s341, %s342
      %p346 = pneg %p340
      %p347 = scmp.eq.s32.totalorder %s33, 3
      %p348 = por %p346, %p347
      %p349 = scmp.ne.s32.totalorder %s341, %s344
      %p350 = scmp.eq.s32.totalorder %s33, 0
      %p351 = por %p349, %p350
      %p352 = scmp.ne.s32.totalorder %s341, %s344
      %p353 = scmp.eq.s32.totalorder %s38, 3
      %p354 = por %p352, %p353
      %p355 = scmp.ne.s32.totalorder %s344, %s345
      %p356 = scmp.eq.s32.totalorder %s38, 0
      %p357 = por %p355, %p356
      %p358 = scmp.ne.s32.totalorder %s344, %s345
      %p359 = scmp.eq.s32.totalorder %s39, 3
      %p360 = por %p358, %p359
      %p362 = scmp.ne.s32.totalorder %s345, %s361
      %p363 = scmp.eq.s32.totalorder %s39, 0
      %p364 = por %p362, %p363
      %s365 = ssub.s32 %s41, %s48
      %p366 = scmp.eq.s32.totalorder %s365, 0
      %s368 = sadd.s32 %s367, 1
      %s369 = scalar_select %p366, %s367, %s368
      %p372 = pneg %p366
      %p373 = scmp.eq.s32.totalorder %s33, 3
      %p374 = por %p372, %p373
      %p375 = scmp.ne.s32.totalorder %s367, %s370
      %p376 = scmp.eq.s32.totalorder %s33, 0
      %p377 = por %p375, %p376
      %p378 = scmp.ne.s32.totalorder %s367, %s370
      %p379 = scmp.eq.s32.totalorder %s38, 3
      %p380 = por %p378, %p379
      %p381 = scmp.ne.s32.totalorder %s370, %s371
      %p382 = scmp.eq.s32.totalorder %s38, 0
      %p383 = por %p381, %p382
      %p384 = scmp.ne.s32.totalorder %s370, %s371
      %p385 = scmp.eq.s32.totalorder %s39, 3
      %p386 = por %p384, %p385
      %p388 = scmp.ne.s32.totalorder %s371, %s387
      %p389 = scmp.eq.s32.totalorder %s39, 0
      %p390 = por %p388, %p389
      %s391 = ssub.s32 %s41, %s48
      %p392 = scmp.eq.s32.totalorder %s391, 0
      %s394 = sadd.s32 %s393, 1
      %s395 = scalar_select %p392, %s393, %s394
      %p398 = pneg %p392
      %p399 = scmp.eq.s32.totalorder %s33, 3
      %p400 = por %p398, %p399
      %p401 = scmp.ne.s32.totalorder %s393, %s396
      %p402 = scmp.eq.s32.totalorder %s33, 0
      %p403 = por %p401, %p402
      %p404 = scmp.ne.s32.totalorder %s393, %s396
      %p405 = scmp.eq.s32.totalorder %s38, 3
      %p406 = por %p404, %p405
      %p407 = scmp.ne.s32.totalorder %s396, %s397
      %p408 = scmp.eq.s32.totalorder %s38, 0
      %p409 = por %p407, %p408
      %p410 = scmp.ne.s32.totalorder %s396, %s397
      %p411 = scmp.eq.s32.totalorder %s39, 3
      %p412 = por %p410, %p411
      %p414 = scmp.ne.s32.totalorder %s397, %s413
      %p415 = scmp.eq.s32.totalorder %s39, 0
      %p416 = por %p414, %p415
      %s417 = ssub.s32 %s41, %s48
      %p418 = scmp.eq.s32.totalorder %s417, 0
      %s420 = sadd.s32 %s419, 1
      %s421 = scalar_select %p418, %s419, %s420
      %p424 = pneg %p418
      %p425 = scmp.eq.s32.totalorder %s33, 3
      %p426 = por %p424, %p425
      %p427 = scmp.ne.s32.totalorder %s419, %s422
      %p428 = scmp.eq.s32.totalorder %s33, 0
      %p429 = por %p427, %p428
      %p430 = scmp.ne.s32.totalorder %s419, %s422
      %p431 = scmp.eq.s32.totalorder %s38, 3
      %p432 = por %p430, %p431
      %p433 = scmp.ne.s32.totalorder %s422, %s423
      %p434 = scmp.eq.s32.totalorder %s38, 0
      %p435 = por %p433, %p434
      %p436 = scmp.ne.s32.totalorder %s422, %s423
      %p437 = scmp.eq.s32.totalorder %s39, 3
      %p438 = por %p436, %p437
      %p440 = scmp.ne.s32.totalorder %s423, %s439
      %p441 = scmp.eq.s32.totalorder %s39, 0
      %p442 = por %p440, %p441
      %s443 = ssub.s32 %s40, %s52
      %p444 = scmp.eq.s32.totalorder %s443, 0
      %s446 = sadd.s32 %s445, 1
      %s447 = scalar_select %p444, %s445, %s446
      %p450 = pneg %p444
      %p451 = scmp.eq.s32.totalorder %s33, 3
      %p452 = por %p450, %p451
      %p453 = scmp.ne.s32.totalorder %s445, %s448
      %p454 = scmp.eq.s32.totalorder %s33, 0
      %p455 = por %p453, %p454
      %p456 = scmp.ne.s32.totalorder %s445, %s448
      %p457 = scmp.eq.s32.totalorder %s38, 3
      %p458 = por %p456, %p457
      %p459 = scmp.ne.s32.totalorder %s448, %s449
      %p460 = scmp.eq.s32.totalorder %s38, 0
      %p461 = por %p459, %p460
      %p462 = scmp.ne.s32.totalorder %s448, %s449
      %p463 = scmp.eq.s32.totalorder %s39, 3
      %p464 = por %p462, %p463
      %p466 = scmp.ne.s32.totalorder %s449, %s465
      %p467 = scmp.eq.s32.totalorder %s39, 0
      %p468 = por %p466, %p467
      %p469 = scmp.le.s32.totalorder 1, %s33
      %p470 = scmp.lt.s32.totalorder %s33, 5
      %p471 = pnand %p469, %p470
      %p472 = pneg %p471
      // Predicated region
      $region9: #{tpu_custom_call.1} parent=5 // pred_check
        _
      $region10: #{tpu_custom_call.1} parent=5 // pred_check_branch
        %474 = sbr.rel (%p471) target = $region12
      $region11: #{tpu_custom_call.1} parent=5 // pred_region
        %s475 = ssub.s32 %s33, 1
      $region12: #{tpu_custom_call.1} parent=5 // pred_fallthru
        _
      %p476 = scmp.lt.s32.totalorder %s33, 4
      // Predicated region
      $region13: #{tpu_custom_call.1} parent=5 // pred_check
        %p477 = pneg %p476
      $region14: #{tpu_custom_call.1} parent=5 // pred_check_branch
        %479 = sbr.rel (%p477) target = $region16
      $region15: #{tpu_custom_call.1} parent=5 // pred_region
        // Predicated region
        $region17: #{tpu_custom_call.1} parent=15 // pred_check
          %p480 = pneg %p65
        $region18: #{tpu_custom_call.1} parent=15 // pred_check_branch
          %482 = sbr.rel (%p480) target = $region20
        $region19: #{tpu_custom_call.1} parent=15 // pred_region
          %p483 = scmp.lt.s32.totalorder %s40, 1
          %s484 = scalar_select %p483, %s40, 1
          %s485 = smul.addr %s484, 8
          %s486 = scalar_lea.vmem %s0, %s485
        $region20: #{tpu_custom_call.1} parent=15 // pred_fallthru
          _
        // Predicated region
        $region21: #{tpu_custom_call.1} parent=15 // pred_check
          %p487 = pneg %p91
        $region22: #{tpu_custom_call.1} parent=15 // pred_check_branch
          %489 = sbr.rel (%p487) target = $region24
        $region23: #{tpu_custom_call.1} parent=15 // pred_region
          %p490 = scmp.lt.s32.totalorder %s40, 1
          %s491 = scalar_select %p490, %s40, 1
          %s492 = smul.addr %s491, 8
          %s493 = scalar_lea.vmem %s1, %s492
        $region24: #{tpu_custom_call.1} parent=15 // pred_fallthru
          _
        // Predicated region
        $region25: #{tpu_custom_call.1} parent=15 // pred_check
          %p494 = pneg %p117
        $region26: #{tpu_custom_call.1} parent=15 // pred_check_branch
          %496 = sbr.rel (%p494) target = $region28
        $region27: #{tpu_custom_call.1} parent=15 // pred_region
          %p497 = scmp.lt.s32.totalorder %s40, 1
          %s498 = scalar_select %p497, %s40, 1
          %s499 = scalar_lea.vmem %s2, %s498
        $region28: #{tpu_custom_call.1} parent=15 // pred_fallthru
          _
        // Predicated region
        $region29: #{tpu_custom_call.1} parent=15 // pred_check
          %p500 = pneg %p143
        $region30: #{tpu_custom_call.1} parent=15 // pred_check_branch
          %502 = sbr.rel (%p500) target = $region32
        $region31: #{tpu_custom_call.1} parent=15 // pred_region
          %s503 = sand.u32 %s133, 1
          %s504 = scalar_lea.sflag [#allocation4], %s503
          %s505 = sand.u32 %s133, 1
          %s506 = smul.addr %s505, 192
          %s507 = scalar_lea.vmem [#allocation3], %s506
          %s509 = ssub.s32 3072, 3072
          %510 = vsyncadd %s504, %s509
          %s511 = smul.addr %s41, 48
          %s512 = smul.addr %s511, 64
          %s513 = scalar_lea.hbm %s3, %s512
          %s514 = sshll.u32 %s507, 4
          %s515 = int_to_ptr.vmem [resolvable:$true] %s514
          %520 = dma.hbm_to_vmem [thread:$0]  %s513, 3072, %s515, %s504, 192, 192, 12
        $region32: #{tpu_custom_call.1} parent=15 // pred_fallthru
          _
        // Predicated region
        $region33: #{tpu_custom_call.1} parent=15 // pred_check
          %p521 = pneg %p169
        $region34: #{tpu_custom_call.1} parent=15 // pred_check_branch
          %523 = sbr.rel (%p521) target = $region36
        $region35: #{tpu_custom_call.1} parent=15 // pred_region
          %p524 = scmp.lt.s32.totalorder %s41, 1
          %s525 = scalar_select %p524, %s41, 1
          %s526 = smul.addr %s525, 3
          %s527 = scalar_lea.vmem %s4, %s526
        $region36: #{tpu_custom_call.1} parent=15 // pred_fallthru
          _
        // Predicated region
        $region37: #{tpu_custom_call.1} parent=15 // pred_check
          %p528 = pneg %p195
        $region38: #{tpu_custom_call.1} parent=15 // pred_check_branch
          %530 = sbr.rel (%p528) target = $region40
        $region39: #{tpu_custom_call.1} parent=15 // pred_region
          %s531 = sand.u32 %s33, 1
          %s532 = scalar_lea.sflag [#allocation7], %s531
          %s533 = sand.u32 %s185, 1
          %s534 = smul.addr %s533, 64
          %s535 = scalar_lea.vmem [#allocation6], %s534
          %s537 = ssub.s32 1024, 1024
          %538 = vsyncadd %s532, %s537
          %s539 = smul.addr %s41, 16
          %s540 = smul.addr %s539, 64
          %s541 = scalar_lea.hbm %s5, %s540
          %s542 = sshll.u32 %s535, 4
          %s543 = int_to_ptr.vmem [resolvable:$true] %s542
          %548 = dma.hbm_to_vmem [thread:$0]  %s541, 1024, %s543, %s532, 64, 64, 4
        $region40: #{tpu_custom_call.1} parent=15 // pred_fallthru
          _
        // Predicated region
        $region41: #{tpu_custom_call.1} parent=15 // pred_check
          %p549 = pneg %p221
        $region42: #{tpu_custom_call.1} parent=15 // pred_check_branch
          %551 = sbr.rel (%p549) target = $region44
        $region43: #{tpu_custom_call.1} parent=15 // pred_region
          %p552 = scmp.lt.s32.totalorder %s41, 1
          %s553 = scalar_select %p552, %s41, 1
          %s554 = scalar_lea.vmem %s6, %s553
        $region44: #{tpu_custom_call.1} parent=15 // pred_fallthru
          _
        // Predicated region
        $region45: #{tpu_custom_call.1} parent=15 // pred_check
          %p555 = pneg %p247
        $region46: #{tpu_custom_call.1} parent=15 // pred_check_branch
          %557 = sbr.rel (%p555) target = $region48
        $region47: #{tpu_custom_call.1} parent=15 // pred_region
          %p558 = scmp.lt.s32.totalorder %s41, 1
          %s559 = scalar_select %p558, %s41, 1
          %s560 = scalar_lea.vmem %s7, %s559
        $region48: #{tpu_custom_call.1} parent=15 // pred_fallthru
          _
        // Predicated region
        $region49: #{tpu_custom_call.1} parent=15 // pred_check
          %p561 = pneg %p273
        $region50: #{tpu_custom_call.1} parent=15 // pred_check_branch
          %563 = sbr.rel (%p561) target = $region52
        $region51: #{tpu_custom_call.1} parent=15 // pred_region
          %p564 = scmp.lt.s32.totalorder %s41, 1
          %s565 = scalar_select %p564, %s41, 1
          %s566 = scalar_lea.vmem %s8, %s565
        $region52: #{tpu_custom_call.1} parent=15 // pred_fallthru
          _
        // Predicated region
        $region53: #{tpu_custom_call.1} parent=15 // pred_check
          %p567 = pneg %p299
        $region54: #{tpu_custom_call.1} parent=15 // pred_check_branch
          %569 = sbr.rel (%p567) target = $region56
        $region55: #{tpu_custom_call.1} parent=15 // pred_region
          %s570 = sand.u32 %s33, 1
          %s571 = scalar_lea.sflag [#allocation7], %s570
          %s572 = sand.u32 %s289, 1
          %s573 = smul.addr %s572, 128
          %s574 = scalar_lea.vmem [#allocation8], %s573
          %s576 = ssub.s32 2048, 2048
          %577 = vsyncadd %s571, %s576
          %s578 = smul.addr %s41, 32
          %s579 = smul.addr %s578, 64
          %s580 = scalar_lea.hbm %s9, %s579
          %s581 = sshll.u32 %s574, 4
          %s582 = int_to_ptr.vmem [resolvable:$true] %s581
          %587 = dma.hbm_to_vmem [thread:$0]  %s580, 2048, %s582, %s571, 128, 128, 8
        $region56: #{tpu_custom_call.1} parent=15 // pred_fallthru
          _
        // Predicated region
        $region57: #{tpu_custom_call.1} parent=15 // pred_check
          %p588 = pneg %p325
        $region58: #{tpu_custom_call.1} parent=15 // pred_check_branch
          %590 = sbr.rel (%p588) target = $region60
        $region59: #{tpu_custom_call.1} parent=15 // pred_region
          %p591 = scmp.lt.s32.totalorder %s41, 1
          %s592 = scalar_select %p591, %s41, 1
          %s593 = smul.addr %s592, 2
          %s594 = scalar_lea.vmem %s10, %s593
        $region60: #{tpu_custom_call.1} parent=15 // pred_fallthru
          _
        // Predicated region
        $region61: #{tpu_custom_call.1} parent=15 // pred_check
          %p595 = pneg %p351
        $region62: #{tpu_custom_call.1} parent=15 // pred_check_branch
          %597 = sbr.rel (%p595) target = $region64
        $region63: #{tpu_custom_call.1} parent=15 // pred_region
          %s598 = sand.u32 %s341, 1
          %s599 = scalar_lea.sflag [#allocation10], %s598
          %s600 = sand.u32 %s341, 1
          %s601 = smul.addr %s600, 128
          %s602 = scalar_lea.vmem [#allocation9], %s601
          %s604 = ssub.s32 2048, 2048
          %605 = vsyncadd %s599, %s604
          %s606 = smul.addr %s41, 32
          %s607 = smul.addr %s606, 64
          %s608 = scalar_lea.hbm %s11, %s607
          %s609 = sshll.u32 %s602, 4
          %s610 = int_to_ptr.vmem [resolvable:$true] %s609
          %615 = dma.hbm_to_vmem [thread:$0]  %s608, 2048, %s610, %s599, 64, 64, 4
        $region64: #{tpu_custom_call.1} parent=15 // pred_fallthru
          _
        // Predicated region
        $region65: #{tpu_custom_call.1} parent=15 // pred_check
          %p616 = pneg %p377
        $region66: #{tpu_custom_call.1} parent=15 // pred_check_branch
          %618 = sbr.rel (%p616) target = $region68
        $region67: #{tpu_custom_call.1} parent=15 // pred_region
          %p619 = scmp.lt.s32.totalorder %s41, 1
          %s620 = scalar_select %p619, %s41, 1
          %s621 = scalar_lea.vmem %s12, %s620
        $region68: #{tpu_custom_call.1} parent=15 // pred_fallthru
          _
        // Predicated region
        $region69: #{tpu_custom_call.1} parent=15 // pred_check
          %p622 = pneg %p403
        $region70: #{tpu_custom_call.1} parent=15 // pred_check_branch
          %624 = sbr.rel (%p622) target = $region72
        $region71: #{tpu_custom_call.1} parent=15 // pred_region
          %p625 = scmp.lt.s32.totalorder %s41, 1
          %s626 = scalar_select %p625, %s41, 1
          %s627 = scalar_lea.vmem %s13, %s626
        $region72: #{tpu_custom_call.1} parent=15 // pred_fallthru
          _
        // Predicated region
        $region73: #{tpu_custom_call.1} parent=15 // pred_check
          %p628 = pneg %p429
        $region74: #{tpu_custom_call.1} parent=15 // pred_check_branch
          %630 = sbr.rel (%p628) target = $region76
        $region75: #{tpu_custom_call.1} parent=15 // pred_region
          %p631 = scmp.lt.s32.totalorder %s41, 1
          %s632 = scalar_select %p631, %s41, 1
          %s633 = scalar_lea.vmem %s14, %s632
        $region76: #{tpu_custom_call.1} parent=15 // pred_fallthru
          _
      $region16: #{tpu_custom_call.1} parent=5 // pred_fallthru
        _
      %p634 = scmp.le.s32.totalorder 1, %s33
      %p635 = scmp.lt.s32.totalorder %s33, 5
      %p636 = pnand %p634, %p635
      %p637 = pneg %p636
      // Predicated region
      $region77: #{tpu_custom_call.1} parent=5 // pred_check
        _
      $region78: #{tpu_custom_call.1} parent=5 // pred_check_branch
        %639 = sbr.rel (%p636) target = $region80
      $region79: #{tpu_custom_call.1} parent=5 // pred_region
        %s640 = ssub.s32 %s33, 1
        %s641 = sand.u32 %s136, 1
        %s642 = scalar_lea.sflag [#allocation4], %s641
        %s643 = sand.u32 %s136, 1
        %s644 = smul.addr %s643, 192
        %s645 = scalar_lea.vmem [#allocation3], %s644
        // Predicated region
        $region81: #{tpu_custom_call.1} parent=79 // pred_check
          %p646 = pneg %p149
        $region82: #{tpu_custom_call.1} parent=79 // pred_check_branch
          %648 = sbr.rel (%p646) target = $region84
        $region83: #{tpu_custom_call.1} parent=79 // pred_region
          %649 = dma.done %s642, 3072
        $region84: #{tpu_custom_call.1} parent=79 // pred_fallthru
          _
        %s650 = sand.u32 %s38, 1
        %s651 = scalar_lea.sflag [#allocation7], %s650
        %s652 = sand.u32 %s188, 1
        %s653 = smul.addr %s652, 64
        %s654 = scalar_lea.vmem [#allocation6], %s653
        // Predicated region
        $region85: #{tpu_custom_call.1} parent=79 // pred_check
          %p655 = pneg %p201
        $region86: #{tpu_custom_call.1} parent=79 // pred_check_branch
          %657 = sbr.rel (%p655) target = $region88
        $region87: #{tpu_custom_call.1} parent=79 // pred_region
          %658 = dma.done %s651, 1024
        $region88: #{tpu_custom_call.1} parent=79 // pred_fallthru
          _
        %s659 = sand.u32 %s38, 1
        %s660 = scalar_lea.sflag [#allocation7], %s659
        %s661 = sand.u32 %s292, 1
        %s662 = smul.addr %s661, 128
        %s663 = scalar_lea.vmem [#allocation8], %s662
        // Predicated region
        $region89: #{tpu_custom_call.1} parent=79 // pred_check
          %p664 = pneg %p305
        $region90: #{tpu_custom_call.1} parent=79 // pred_check_branch
          %666 = sbr.rel (%p664) target = $region92
        $region91: #{tpu_custom_call.1} parent=79 // pred_region
          %667 = dma.done %s660, 2048
        $region92: #{tpu_custom_call.1} parent=79 // pred_fallthru
          _
        %s668 = sand.u32 %s344, 1
        %s669 = scalar_lea.sflag [#allocation10], %s668
        %s670 = sand.u32 %s344, 1
        %s671 = smul.addr %s670, 128
        %s672 = scalar_lea.vmem [#allocation9], %s671
        // Predicated region
        $region93: #{tpu_custom_call.1} parent=79 // pred_check
          %p673 = pneg %p357
        $region94: #{tpu_custom_call.1} parent=79 // pred_check_branch
          %675 = sbr.rel (%p673) target = $region96
        $region95: #{tpu_custom_call.1} parent=79 // pred_region
          %676 = dma.done %s669, 2048
        $region96: #{tpu_custom_call.1} parent=79 // pred_fallthru
          _
        %p677 = scmp.lt.s32.totalorder %s42, 1
        %s678 = scalar_select %p677, %s42, 1
        %s679 = smul.addr %s678, 8
        %s680 = scalar_lea.vmem %s0, %s679
        %p681 = pneg %p71
        %p682 = pneg %p68
        %p683 = scmp.lt.s32.totalorder %s42, 1
        %s684 = scalar_select %p683, %s42, 1
        %s685 = smul.addr %s684, 8
        %s686 = scalar_lea.vmem %s1, %s685
        %p687 = pneg %p97
        %p688 = pneg %p94
        %p689 = scmp.lt.s32.totalorder %s42, 1
        %s690 = scalar_select %p689, %s42, 1
        %s691 = scalar_lea.vmem %s2, %s690
        %p692 = pneg %p123
        %p693 = pneg %p120
        %s694 = sand.u32 %s136, 1
        %s695 = scalar_lea.sflag [#allocation4], %s694
        %s696 = sand.u32 %s136, 1
        %s697 = smul.addr %s696, 192
        %s698 = scalar_lea.vmem [#allocation3], %s697
        %p699 = pneg %p149
        %p700 = pneg %p146
        %p701 = scmp.lt.s32.totalorder %s43, 1
        %s702 = scalar_select %p701, %s43, 1
        %s703 = smul.addr %s702, 3
        %s704 = scalar_lea.vmem %s4, %s703
        %p705 = pneg %p175
        %p706 = pneg %p172
        %s707 = sand.u32 %s38, 1
        %s708 = scalar_lea.sflag [#allocation7], %s707
        %s709 = sand.u32 %s188, 1
        %s710 = smul.addr %s709, 64
        %s711 = scalar_lea.vmem [#allocation6], %s710
        %p712 = pneg %p201
        %p713 = pneg %p198
        %p714 = scmp.lt.s32.totalorder %s43, 1
        %s715 = scalar_select %p714, %s43, 1
        %s716 = scalar_lea.vmem %s6, %s715
        %p717 = pneg %p227
        %p718 = pneg %p224
        %p719 = scmp.lt.s32.totalorder %s43, 1
        %s720 = scalar_select %p719, %s43, 1
        %s721 = scalar_lea.vmem %s7, %s720
        %p722 = pneg %p253
        %p723 = pneg %p250
        %p724 = scmp.lt.s32.totalorder %s43, 1
        %s725 = scalar_select %p724, %s43, 1
        %s726 = scalar_lea.vmem %s8, %s725
        %p727 = pneg %p279
        %p728 = pneg %p276
        %s729 = sand.u32 %s38, 1
        %s730 = scalar_lea.sflag [#allocation7], %s729
        %s731 = sand.u32 %s292, 1
        %s732 = smul.addr %s731, 128
        %s733 = scalar_lea.vmem [#allocation8], %s732
        %p734 = pneg %p305
        %p735 = pneg %p302
        %p736 = scmp.lt.s32.totalorder %s43, 1
        %s737 = scalar_select %p736, %s43, 1
        %s738 = smul.addr %s737, 2
        %s739 = scalar_lea.vmem %s10, %s738
        %p740 = pneg %p331
        %p741 = pneg %p328
        %s742 = sand.u32 %s344, 1
        %s743 = scalar_lea.sflag [#allocation10], %s742
        %s744 = sand.u32 %s344, 1
        %s745 = smul.addr %s744, 128
        %s746 = scalar_lea.vmem [#allocation9], %s745
        %p747 = pneg %p357
        %p748 = pneg %p354
        %p749 = scmp.lt.s32.totalorder %s43, 1
        %s750 = scalar_select %p749, %s43, 1
        %s751 = scalar_lea.vmem %s12, %s750
        %p752 = pneg %p383
        %p753 = pneg %p380
        %p754 = scmp.lt.s32.totalorder %s43, 1
        %s755 = scalar_select %p754, %s43, 1
        %s756 = scalar_lea.vmem %s13, %s755
        %p757 = pneg %p409
        %p758 = pneg %p406
        %p759 = scmp.lt.s32.totalorder %s43, 1
        %s760 = scalar_select %p759, %s43, 1
        %s761 = scalar_lea.vmem %s14, %s760
        %p762 = pneg %p435
        %p763 = pneg %p432
        %p764 = pneg %p461
        %p765 = pneg %p458
        %s766 = sand.u32 %s448, 1
        %s767 = scalar_lea.sflag [#allocation5], %s766
        %s768 = sand.u32 %s448, 1
        %s769 = smul.addr %s768, 8
        %s770 = scalar_lea.vmem [#allocation11], %s769
        %p771 = scmp.lt.s32.totalorder %s42, 1
        %s772 = scalar_select %p771, %s42, 1
        %s773 = smul.addr %s772, 8
        %s774 = scalar_lea.vmem %s0, %s773
        %p775 = scmp.lt.s32.totalorder %s42, 1
        %s776 = scalar_select %p775, %s42, 1
        %s777 = smul.addr %s776, 8
        %s778 = scalar_lea.vmem %s1, %s777
        %p779 = scmp.lt.s32.totalorder %s42, 1
        %s780 = scalar_select %p779, %s42, 1
        %s781 = scalar_lea.vmem %s2, %s780
        %p782 = scmp.lt.s32.totalorder %s43, 1
        %s783 = scalar_select %p782, %s43, 1
        %s784 = smul.addr %s783, 3
        %s785 = scalar_lea.vmem %s4, %s784
        %p786 = scmp.lt.s32.totalorder %s43, 1
        %s787 = scalar_select %p786, %s43, 1
        %s788 = scalar_lea.vmem %s6, %s787
        %p789 = scmp.lt.s32.totalorder %s43, 1
        %s790 = scalar_select %p789, %s43, 1
        %s791 = scalar_lea.vmem %s7, %s790
        %p792 = scmp.lt.s32.totalorder %s43, 1
        %s793 = scalar_select %p792, %s43, 1
        %s794 = scalar_lea.vmem %s8, %s793
        %p795 = scmp.lt.s32.totalorder %s43, 1
        %s796 = scalar_select %p795, %s43, 1
        %s797 = smul.addr %s796, 2
        %s798 = scalar_lea.vmem %s10, %s797
        %p799 = scmp.lt.s32.totalorder %s43, 1
        %s800 = scalar_select %p799, %s43, 1
        %s801 = scalar_lea.vmem %s12, %s800
        %p802 = scmp.lt.s32.totalorder %s43, 1
        %s803 = scalar_select %p802, %s43, 1
        %s804 = scalar_lea.vmem %s13, %s803
        %p805 = scmp.lt.s32.totalorder %s43, 1
        %s806 = scalar_select %p805, %s43, 1
        %s807 = scalar_lea.vmem %s14, %s806
        %p809 = scmp.eq.s32.totalorder %s43, 0
        // Predicated region
        $region97: #{tpu_custom_call.1} parent=79 // pred_check
          %p810 = pneg %p809
        $region98: #{tpu_custom_call.1} parent=79 // pred_check_branch
          %812 = sbr.rel (%p810) target = $region100
        $region99: #{tpu_custom_call.1} parent=79 // pred_region
          %v813 = vld [vmem:[%s774] sm:$0xff]
          %v814 = vpack.c.bf16 %v813, %v813
          %815 = vst [vmem:[#allocation2] sm:$0xf] %v814
        $region100: #{tpu_custom_call.1} parent=79 // pred_fallthru
          _
        %v816 = vld [vmem:[#allocation2] sm:$0xf]
        %v817 = vunpack.c.l.bf16 %v816
        %v818 = vpack.c.bf16 %v817, %v817
        %v819 = vld [vmem:[%s778] sm:$0xff]
        %v820 = vld [vmem:[%s781] sm:$0x1]
        %v821 = vld [vmem:[%s645] sm:$0xff]
        %v822 = vld [vmem:[%s645 + $0x8] sm:$0xf]
        %v823 = vld [vmem:[%s645 + $0xc] sm:$0xff]
        %v824 = vld [vmem:[%s645 + $0x14] sm:$0xf]
        %v825 = vld [vmem:[%s645 + $0x18] sm:$0xff]
        %v826 = vld [vmem:[%s645 + $0x20] sm:$0xf]
        %v827 = vld [vmem:[%s645 + $0x24] sm:$0xff]
        %v828 = vld [vmem:[%s645 + $0x2c] sm:$0xf]
        %v829 = vld [vmem:[%s645 + $0x30] sm:$0xff]
        %v830 = vld [vmem:[%s645 + $0x38] sm:$0xf]
        %v831 = vld [vmem:[%s645 + $0x3c] sm:$0xff]
        %v832 = vld [vmem:[%s645 + $0x44] sm:$0xf]
        %v833 = vld [vmem:[%s645 + $0x48] sm:$0xff]
        %v834 = vld [vmem:[%s645 + $0x50] sm:$0xf]
        %v835 = vld [vmem:[%s645 + $0x54] sm:$0xff]
        %v836 = vld [vmem:[%s645 + $0x5c] sm:$0xf]
        %v837 = vld [vmem:[%s645 + $0x60] sm:$0xff]
        %v838 = vld [vmem:[%s645 + $0x68] sm:$0xf]
        %v839 = vld [vmem:[%s645 + $0x6c] sm:$0xff]
        %v840 = vld [vmem:[%s645 + $0x74] sm:$0xf]
        %v841 = vld [vmem:[%s645 + $0x78] sm:$0xff]
        %v842 = vld [vmem:[%s645 + $0x80] sm:$0xf]
        %v843 = vld [vmem:[%s645 + $0x84] sm:$0xff]
        %v844 = vld [vmem:[%s645 + $0x8c] sm:$0xf]
        %v845 = vld [vmem:[%s645 + $0x90] sm:$0xff]
        %v846 = vld [vmem:[%s645 + $0x98] sm:$0xf]
        %v847 = vld [vmem:[%s645 + $0x9c] sm:$0xff]
        %v848 = vld [vmem:[%s645 + $0xa4] sm:$0xf]
        %v849 = vld [vmem:[%s645 + $0xa8] sm:$0xff]
        %v850 = vld [vmem:[%s645 + $0xb0] sm:$0xf]
        %v851 = vld [vmem:[%s645 + $0xb4] sm:$0xff]
        %v852 = vld [vmem:[%s645 + $0xbc] sm:$0xf]
        %v853 = vld [vmem:[%s785] sm:$0x7]
        %v855 = vlaneseq
        %v856 = vshrl.u32 %v855, 7
        %v857 = vsub.s32 0, %v856
        %v858 = vrot.slane %v853, %v857
        %v859 = vlaneseq
        %v860 = vshrl.u32 %v859, 7
        %v861 = vsub.s32 1, %v860
        %v862 = vrot.slane %v853, %v861
        %v863 = vlaneseq
        %v864 = vshrl.u32 %v863, 7
        %v865 = vsub.s32 2, %v864
        %v866 = vrot.slane %v853, %v865
        %v902 = vunpack.c.l.b16 %v821
        %v903 = vunpack.c.h.b16 %v821
        %v904 = vunpack.c.l.b16 %v822
        %v905 = vunpack.c.l.b16 %v823
        %v906 = vunpack.c.h.b16 %v823
        %v907 = vunpack.c.l.b16 %v824
        %v908 = vunpack.c.l.b16 %v825
        %v909 = vunpack.c.h.b16 %v825
        %v910 = vunpack.c.l.b16 %v826
        %v911 = vunpack.c.l.b16 %v827
        %v912 = vunpack.c.h.b16 %v827
        %v913 = vunpack.c.l.b16 %v828
        %v914 = vunpack.c.l.b16 %v829
        %v915 = vunpack.c.h.b16 %v829
        %v916 = vunpack.c.l.b16 %v830
        %v917 = vunpack.c.l.b16 %v831
        %v918 = vunpack.c.h.b16 %v831
        %v919 = vunpack.c.l.b16 %v832
        %v920 = vunpack.c.l.b16 %v833
        %v921 = vunpack.c.h.b16 %v833
        %v922 = vunpack.c.l.b16 %v834
        %v923 = vunpack.c.l.b16 %v835
        %v924 = vunpack.c.h.b16 %v835
        %v925 = vunpack.c.l.b16 %v836
        %v926 = vunpack.c.l.b16 %v837
        %v927 = vunpack.c.h.b16 %v837
        %v928 = vunpack.c.l.b16 %v838
        %v929 = vunpack.c.l.b16 %v839
        %v930 = vunpack.c.h.b16 %v839
        %v931 = vunpack.c.l.b16 %v840
        %v932 = vunpack.c.l.b16 %v841
        %v933 = vunpack.c.h.b16 %v841
        %v934 = vunpack.c.l.b16 %v842
        %v935 = vunpack.c.l.b16 %v843
        %v936 = vunpack.c.h.b16 %v843
        %v937 = vunpack.c.l.b16 %v844
        %v938 = vunpack.c.l.b16 %v845
        %v939 = vunpack.c.h.b16 %v845
        %v940 = vunpack.c.l.b16 %v846
        %v941 = vunpack.c.l.b16 %v847
        %v942 = vunpack.c.h.b16 %v847
        %v943 = vunpack.c.l.b16 %v848
        %v944 = vunpack.c.l.b16 %v849
        %v945 = vunpack.c.h.b16 %v849
        %v946 = vunpack.c.l.b16 %v850
        %v947 = vunpack.c.l.b16 %v851
        %v948 = vunpack.c.h.b16 %v851
        %v949 = vunpack.c.l.b16 %v852
        %v950 = vpack.c.b16 %v905, %v902
        %v951 = vpack.c.b16 %v906, %v903
        %v952 = vpack.c.b16 %v907, %v904
        %v953 = vpack.c.b16 %v911, %v908
        %v954 = vpack.c.b16 %v912, %v909
        %v955 = vpack.c.b16 %v913, %v910
        %v956 = vpack.c.b16 %v917, %v914
        %v957 = vpack.c.b16 %v918, %v915
        %v958 = vpack.c.b16 %v919, %v916
        %v959 = vpack.c.b16 %v923, %v920
        %v960 = vpack.c.b16 %v924, %v921
        %v961 = vpack.c.b16 %v925, %v922
        %v962 = vpack.c.b16 %v929, %v926
        %v963 = vpack.c.b16 %v930, %v927
        %v964 = vpack.c.b16 %v931, %v928
        %v965 = vpack.c.b16 %v935, %v932
        %v966 = vpack.c.b16 %v936, %v933
        %v967 = vpack.c.b16 %v937, %v934
        %v968 = vpack.c.b16 %v941, %v938
        %v969 = vpack.c.b16 %v942, %v939
        %v970 = vpack.c.b16 %v943, %v940
        %v971 = vpack.c.b16 %v947, %v944
        %v972 = vpack.c.b16 %v948, %v945
        %v973 = vpack.c.b16 %v949, %v946
        %998 = vmatprep.subr.bf16.mxu0 %v951
        %999 = vmatpush1.bf16.msra.mxu0 %v950
        %1000 = vmatprep.subr.bf16.mxu0 %v954
        %1001 = vmatpush1.bf16.msra.mxu0 %v953
        %1002 = vmatprep.subr.bf16.mxu0 %v957
        %1003 = vmatpush1.bf16.msra.mxu0 %v956
        %1004 = vmatprep.subr.bf16.mxu0 %v960
        %1005 = vmatpush1.bf16.msra.mxu0 %v959
        %1006 = vmatprep.subr.bf16.mxu0 %v963
        %1007 = vmatpush1.bf16.msra.mxu0 %v962
        %1008 = vmatprep.subr.bf16.mxu0 %v966
        %1009 = vmatpush1.bf16.msra.mxu0 %v965
        %1010 = vmatprep.subr.bf16.mxu0 %v969
        %1011 = vmatpush1.bf16.msra.mxu0 %v968
        %1012 = vmatprep.subr.bf16.mxu0 %v972
        %1013 = vmatpush1.bf16.msra.mxu0 %v971
        %1014 = vmatprep.subr.bf16.mxu0 0
        %1015 = vmatpush1.bf16.msra.mxu0 0
        %1016 = vmatprep.subr.bf16.mxu0 0
        %1017 = vmatpush1.bf16.msra.mxu0 0
        %1018 = vmatprep.subr.bf16.mxu0 0
        %1019 = vmatpush1.bf16.msra.mxu0 0
        %1020 = vmatprep.subr.bf16.mxu0 0
        %1021 = vmatpush1.bf16.msra.mxu0 0
        %1022 = vmatprep.subr.bf16.mxu0 0
        %1023 = vmatpush1.bf16.msra.mxu0 0
        %1024 = vmatprep.subr.bf16.mxu0 0
        %1025 = vmatpush1.bf16.msra.mxu0 0
        %1026 = vmatprep.subr.bf16.mxu0 0
        %1027 = vmatpush1.bf16.msra.mxu0 0
        %1028 = vmatprep.subr.bf16.mxu0 0
        %1029 = vmatpush1.bf16.msra.mxu0 0
        %1030 = vmatprep.mubr.bf16.mxu0 0
        %1031 = vmatmul.mubr.bf16.gmra.mrb[0].mxu0 %v818
        %v1032 = vpop.f32.mrb[0].mxu0
        %v1033 = vadd.f32 %v858, %v1032
        %v1034 = vpop.f32.mrb[0].mxu0
        %v1035 = vadd.f32 %v862, %v1034
        %v1036 = vpop.f32.mrb[0].mxu0
        %v1037 = vpop.f32.mrb[0].mxu0
        %1038 = vdwg.mxu0
        %1039 = vmatprep.subr.bf16.mxu0 0
        %1040 = vmatpush1.bf16.msra.mxu0 %v952
        %1041 = vmatprep.subr.bf16.mxu0 0
        %1042 = vmatpush1.bf16.msra.mxu0 %v955
        %1043 = vmatprep.subr.bf16.mxu0 0
        %1044 = vmatpush1.bf16.msra.mxu0 %v958
        %1045 = vmatprep.subr.bf16.mxu0 0
        %1046 = vmatpush1.bf16.msra.mxu0 %v961
        %1047 = vmatprep.subr.bf16.mxu0 0
        %1048 = vmatpush1.bf16.msra.mxu0 %v964
        %1049 = vmatprep.subr.bf16.mxu0 0
        %1050 = vmatpush1.bf16.msra.mxu0 %v967
        %1051 = vmatprep.subr.bf16.mxu0 0
        %1052 = vmatpush1.bf16.msra.mxu0 %v970
        %1053 = vmatprep.subr.bf16.mxu0 0
        %1054 = vmatpush1.bf16.msra.mxu0 %v973
        %1055 = vmatprep.subr.bf16.mxu0 0
        %1056 = vmatpush1.bf16.msra.mxu0 0
        %1057 = vmatprep.subr.bf16.mxu0 0
        %1058 = vmatpush1.bf16.msra.mxu0 0
        %1059 = vmatprep.subr.bf16.mxu0 0
        %1060 = vmatpush1.bf16.msra.mxu0 0
        %1061 = vmatprep.subr.bf16.mxu0 0
        %1062 = vmatpush1.bf16.msra.mxu0 0
        %1063 = vmatprep.subr.bf16.mxu0 0
        %1064 = vmatpush1.bf16.msra.mxu0 0
        %1065 = vmatprep.subr.bf16.mxu0 0
        %1066 = vmatpush1.bf16.msra.mxu0 0
        %1067 = vmatprep.subr.bf16.mxu0 0
        %1068 = vmatpush1.bf16.msra.mxu0 0
        %1069 = vmatprep.subr.bf16.mxu0 0
        %1070 = vmatpush1.bf16.msra.mxu0 0
        %1071 = vmatprep.mubr.bf16.mxu0 0
        %1072 = vmatmul.mubr.bf16.gmra.mrb[0].mxu0 %v818
        %v1073 = vpop.f32.mrb[0].mxu0
        %v1074 = vadd.f32 %v866, %v1073
        %v1075 = vpop.f32.mrb[0].mxu0
        %v1076 = vpop.f32.mrb[0].mxu0
        %v1077 = vpop.f32.mrb[0].mxu0
        %1078 = vdwg.mxu0
        %v1079 = vpack.c.bf16 %v1033, %v1033
        %v1080 = vpack.c.bf16 %v1035, %v1035
        %v1081 = vpack.c.bf16 %v1074, %v1074
        %v1083 = vlaneseq
        %v1084 = vshrl.u32 %v1083, 7
        %v1085 = vsub.s32 0, %v1084
        %v1086 = vrot.slane %v820, %v1085
        %vm1088 = vcmask 523264
        %v1090 = vsel %vm1088, %v1079, 0
        %v1093 = vsel %vm1088, %v1080, 0
        %1095 = vmatprep.subr.bf16.mxu0 0
        %1096 = vmatpush1.bf16.xpose.msra.mxu0 %v1093
        %1097 = vmatprep.subr.bf16.mxu0 0
        %1098 = vmatpush1.bf16.xpose.msra.mxu0 0
        %1099 = vmatprep.subr.bf16.mxu0 0
        %1100 = vmatpush1.bf16.xpose.msra.mxu0 0
        %1101 = vmatprep.subr.bf16.mxu0 0
        %1102 = vmatpush1.bf16.xpose.msra.mxu0 0
        %1103 = vmatprep.subr.bf16.mxu0 0
        %1104 = vmatpush1.bf16.xpose.msra.mxu0 0
        %1105 = vmatprep.subr.bf16.mxu0 0
        %1106 = vmatpush1.bf16.xpose.msra.mxu0 0
        %1107 = vmatprep.subr.bf16.mxu0 0
        %1108 = vmatpush1.bf16.xpose.msra.mxu0 0
        %1109 = vmatprep.subr.bf16.mxu0 0
        %1110 = vmatpush1.bf16.xpose.msra.mxu0 0
        %1111 = vmatprep.subr.bf16.mxu0 0
        %1112 = vmatpush1.bf16.xpose.msra.mxu0 0
        %1113 = vmatprep.subr.bf16.mxu0 0
        %1114 = vmatpush1.bf16.xpose.msra.mxu0 0
        %1115 = vmatprep.subr.bf16.mxu0 0
        %1116 = vmatpush1.bf16.xpose.msra.mxu0 0
        %1117 = vmatprep.subr.bf16.mxu0 0
        %1118 = vmatpush1.bf16.xpose.msra.mxu0 0
        %1119 = vmatprep.subr.bf16.mxu0 0
        %1120 = vmatpush1.bf16.xpose.msra.mxu0 0
        %1121 = vmatprep.subr.bf16.mxu0 0
        %1122 = vmatpush1.bf16.xpose.msra.mxu0 0
        %1123 = vmatprep.subr.bf16.mxu0 0
        %1124 = vmatpush1.bf16.xpose.msra.mxu0 0
        %1125 = vmatprep.subr.bf16.mxu0 0
        %1126 = vmatpush1.bf16.xpose.msra.mxu0 0
        %1127 = vmatprep.mubr.bf16.mxu0 0
        %1128 = vmatmul.mubr.bf16.gmra.mrb[0].mxu0 %v1090
        %v1129 = vpop.f32.mrb[0].mxu0
        %v1130 = vadd.f32 %v1086, %v1129
        %v1131 = vpop.f32.mrb[0].mxu0
        %v1132 = vpop.f32.mrb[0].mxu0
        %v1133 = vpop.f32.mrb[0].mxu0
        %1134 = vdwg.mxu0
        %vm1135 = vcmask 64512
        %v1136 = vsel %vm1135, %v1130, -inf
        %1137 = vmax.xlane.f32.xlu0 %v1136
        %v1138 = vpop.xlane.xlu0 %1137
        %v1139 = vsub.f32 %v1130, %v1138
        %v1140 = vmul.f32 %v1139, 1.442695
        %v1141 = vpow.pop %v1140
        %v1142 = vsel %vm1135, %v1141, 0.0
        %1143 = vadd.xlane.f32.xlu0 %v1142
        %v1144 = vpop.xlane.xlu0 %1143
        %v1145 = vrcp.pop %v1144
        %v1146 = vmul.f32 %v1141, %v1145
        %v1147 = vpack.c.bf16 %v1146, %v1146
        %v1149 = vsel %vm1135, %v1147, 0
        %vm1151 = vcmask 1043456
        %v1153 = vsel %vm1151, %v1081, 0
        %1155 = vmatprep.subr.bf16.mxu0 0
        %1156 = vmatpush1.bf16.msra.mxu0 %v1153
        %1157 = vmatprep.subr.bf16.mxu0 0
        %1158 = vmatpush1.bf16.msra.mxu0 0
        %1159 = vmatprep.subr.bf16.mxu0 0
        %1160 = vmatpush1.bf16.msra.mxu0 0
        %1161 = vmatprep.subr.bf16.mxu0 0
        %1162 = vmatpush1.bf16.msra.mxu0 0
        %1163 = vmatprep.subr.bf16.mxu0 0
        %1164 = vmatpush1.bf16.msra.mxu0 0
        %1165 = vmatprep.subr.bf16.mxu0 0
        %1166 = vmatpush1.bf16.msra.mxu0 0
        %1167 = vmatprep.subr.bf16.mxu0 0
        %1168 = vmatpush1.bf16.msra.mxu0 0
        %1169 = vmatprep.subr.bf16.mxu0 0
        %1170 = vmatpush1.bf16.msra.mxu0 0
        %1171 = vmatprep.subr.bf16.mxu0 0
        %1172 = vmatpush1.bf16.msra.mxu0 0
        %1173 = vmatprep.subr.bf16.mxu0 0
        %1174 = vmatpush1.bf16.msra.mxu0 0
        %1175 = vmatprep.subr.bf16.mxu0 0
        %1176 = vmatpush1.bf16.msra.mxu0 0
        %1177 = vmatprep.subr.bf16.mxu0 0
        %1178 = vmatpush1.bf16.msra.mxu0 0
        %1179 = vmatprep.subr.bf16.mxu0 0
        %1180 = vmatpush1.bf16.msra.mxu0 0
        %1181 = vmatprep.subr.bf16.mxu0 0
        %1182 = vmatpush1.bf16.msra.mxu0 0
        %1183 = vmatprep.subr.bf16.mxu0 0
        %1184 = vmatpush1.bf16.msra.mxu0 0
        %1185 = vmatprep.subr.bf16.mxu0 0
        %1186 = vmatpush1.bf16.msra.mxu0 0
        %1187 = vmatprep.mubr.bf16.mxu0 0
        %1188 = vmatmul.mubr.bf16.gmra.mrb[0].mxu0 %v1149
        %v1189 = vpop.f32.mrb[0].mxu0
        %v1190 = vadd.f32 0.0, %v1189
        %v1191 = vpop.f32.mrb[0].mxu0
        %v1192 = vpop.f32.mrb[0].mxu0
        %v1193 = vpop.f32.mrb[0].mxu0
        %1194 = vdwg.mxu0
        %1196 = vrot.lane.b32.xlu0 %v1079, 64
        %v1197 = vpop.permute.xlu0 %1196
        %1199 = vrot.lane.b32.xlu0 %v1080, 64
        %v1200 = vpop.permute.xlu0 %1199
        %v1202 = vsel %vm1088, %v1197, 0
        %v1205 = vsel %vm1088, %v1200, 0
        %1207 = vmatprep.subr.bf16.mxu0 0
        %1208 = vmatpush1.bf16.xpose.msra.mxu0 %v1205
        %1209 = vmatprep.subr.bf16.mxu0 0
        %1210 = vmatpush1.bf16.xpose.msra.mxu0 0
        %1211 = vmatprep.subr.bf16.mxu0 0
        %1212 = vmatpush1.bf16.xpose.msra.mxu0 0
        %1213 = vmatprep.subr.bf16.mxu0 0
        %1214 = vmatpush1.bf16.xpose.msra.mxu0 0
        %1215 = vmatprep.subr.bf16.mxu0 0
        %1216 = vmatpush1.bf16.xpose.msra.mxu0 0
        %1217 = vmatprep.subr.bf16.mxu0 0
        %1218 = vmatpush1.bf16.xpose.msra.mxu0 0
        %1219 = vmatprep.subr.bf16.mxu0 0
        %1220 = vmatpush1.bf16.xpose.msra.mxu0 0
        %1221 = vmatprep.subr.bf16.mxu0 0
        %1222 = vmatpush1.bf16.xpose.msra.mxu0 0
        %1223 = vmatprep.subr.bf16.mxu0 0
        %1224 = vmatpush1.bf16.xpose.msra.mxu0 0
        %1225 = vmatprep.subr.bf16.mxu0 0
        %1226 = vmatpush1.bf16.xpose.msra.mxu0 0
        %1227 = vmatprep.subr.bf16.mxu0 0
        %1228 = vmatpush1.bf16.xpose.msra.mxu0 0
        %1229 = vmatprep.subr.bf16.mxu0 0
        %1230 = vmatpush1.bf16.xpose.msra.mxu0 0
        %1231 = vmatprep.subr.bf16.mxu0 0
        %1232 = vmatpush1.bf16.xpose.msra.mxu0 0
        %1233 = vmatprep.subr.bf16.mxu0 0
        %1234 = vmatpush1.bf16.xpose.msra.mxu0 0
        %1235 = vmatprep.subr.bf16.mxu0 0
        %1236 = vmatpush1.bf16.xpose.msra.mxu0 0
        %1237 = vmatprep.subr.bf16.mxu0 0
        %1238 = vmatpush1.bf16.xpose.msra.mxu0 0
        %1239 = vmatprep.mubr.bf16.mxu0 0
        %1240 = vmatmul.mubr.bf16.gmra.mrb[0].mxu0 %v1202
        %v1241 = vpop.f32.mrb[0].mxu0
        %v1242 = vadd.f32 %v1086, %v1241
        %v1243 = vpop.f32.mrb[0].mxu0
        %v1244 = vpop.f32.mrb[0].mxu0
        %v1245 = vpop.f32.mrb[0].mxu0
        %1246 = vdwg.mxu0
        %v1247 = vsel %vm1135, %v1242, -inf
        %1248 = vmax.xlane.f32.xlu0 %v1247
        %v1249 = vpop.xlane.xlu0 %1248
        %v1250 = vsub.f32 %v1242, %v1249
        %v1251 = vmul.f32 %v1250, 1.442695
        %v1252 = vpow.pop %v1251
        %v1253 = vsel %vm1135, %v1252, 0.0
        %1254 = vadd.xlane.f32.xlu0 %v1253
        %v1255 = vpop.xlane.xlu0 %1254
        %v1256 = vrcp.pop %v1255
        %v1257 = vmul.f32 %v1252, %v1256
        %v1258 = vpack.c.bf16 %v1257, %v1257
        %1260 = vrot.lane.b32.xlu0 %v1081, 64
        %v1261 = vpop.permute.xlu0 %1260
        %v1263 = vsel %vm1135, %v1258, 0
        %v1266 = vsel %vm1151, %v1261, 0
        %1268 = vmatprep.subr.bf16.mxu0 0
        %1269 = vmatpush1.bf16.msra.mxu0 %v1266
        %1270 = vmatprep.subr.bf16.mxu0 0
        %1271 = vmatpush1.bf16.msra.mxu0 0
        %1272 = vmatprep.subr.bf16.mxu0 0
        %1273 = vmatpush1.bf16.msra.mxu0 0
        %1274 = vmatprep.subr.bf16.mxu0 0
        %1275 = vmatpush1.bf16.msra.mxu0 0
        %1276 = vmatprep.subr.bf16.mxu0 0
        %1277 = vmatpush1.bf16.msra.mxu0 0
        %1278 = vmatprep.subr.bf16.mxu0 0
        %1279 = vmatpush1.bf16.msra.mxu0 0
        %1280 = vmatprep.subr.bf16.mxu0 0
        %1281 = vmatpush1.bf16.msra.mxu0 0
        %1282 = vmatprep.subr.bf16.mxu0 0
        %1283 = vmatpush1.bf16.msra.mxu0 0
        %1284 = vmatprep.subr.bf16.mxu0 0
        %1285 = vmatpush1.bf16.msra.mxu0 0
        %1286 = vmatprep.subr.bf16.mxu0 0
        %1287 = vmatpush1.bf16.msra.mxu0 0
        %1288 = vmatprep.subr.bf16.mxu0 0
        %1289 = vmatpush1.bf16.msra.mxu0 0
        %1290 = vmatprep.subr.bf16.mxu0 0
        %1291 = vmatpush1.bf16.msra.mxu0 0
        %1292 = vmatprep.subr.bf16.mxu0 0
        %1293 = vmatpush1.bf16.msra.mxu0 0
        %1294 = vmatprep.subr.bf16.mxu0 0
        %1295 = vmatpush1.bf16.msra.mxu0 0
        %1296 = vmatprep.subr.bf16.mxu0 0
        %1297 = vmatpush1.bf16.msra.mxu0 0
        %1298 = vmatprep.subr.bf16.mxu0 0
        %1299 = vmatpush1.bf16.msra.mxu0 0
        %1300 = vmatprep.mubr.bf16.mxu0 0
        %1301 = vmatmul.mubr.bf16.gmra.mrb[0].mxu0 %v1263
        %v1302 = vpop.f32.mrb[0].mxu0
        %v1303 = vadd.f32 0.0, %v1302
        %v1304 = vpop.f32.mrb[0].mxu0
        %v1305 = vpop.f32.mrb[0].mxu0
        %v1306 = vpop.f32.mrb[0].mxu0
        %1307 = vdwg.mxu0
        %1309 = vrot.lane.b32.xlu0 %v1303, 64
        %v1310 = vpop.permute.xlu0 %1309
        %v1312 = vsel %vm1088, %v1190, %v1310
        %v1313 = vpack.c.bf16 %v1312, %v1312
        %v1314 = vld [vmem:[%s788] sm:$0x1]
        %v1316 = vlaneseq
        %v1317 = vshrl.u32 %v1316, 7
        %v1318 = vsub.s32 0, %v1317
        %v1319 = vrot.slane %v1314, %v1318
        %v1321 = vadd.f32 %v817, %v1319
        %v1322 = vld [vmem:[%s654] sm:$0xf]
        %v1323 = vld [vmem:[%s654 + $0x4] sm:$0xf]
        %v1324 = vld [vmem:[%s654 + $0x8] sm:$0xf]
        %v1325 = vld [vmem:[%s654 + $0xc] sm:$0xf]
        %v1326 = vld [vmem:[%s654 + $0x10] sm:$0xf]
        %v1327 = vld [vmem:[%s654 + $0x14] sm:$0xf]
        %v1328 = vld [vmem:[%s654 + $0x18] sm:$0xf]
        %v1329 = vld [vmem:[%s654 + $0x1c] sm:$0xf]
        %v1330 = vld [vmem:[%s654 + $0x20] sm:$0xf]
        %v1331 = vld [vmem:[%s654 + $0x24] sm:$0xf]
        %v1332 = vld [vmem:[%s654 + $0x28] sm:$0xf]
        %v1333 = vld [vmem:[%s654 + $0x2c] sm:$0xf]
        %v1334 = vld [vmem:[%s654 + $0x30] sm:$0xf]
        %v1335 = vld [vmem:[%s654 + $0x34] sm:$0xf]
        %v1336 = vld [vmem:[%s654 + $0x38] sm:$0xf]
        %v1337 = vld [vmem:[%s654 + $0x3c] sm:$0xf]
        %v1354 = vunpack.c.l.b16 %v1322
        %v1355 = vunpack.c.l.b16 %v1323
        %v1356 = vunpack.c.l.b16 %v1324
        %v1357 = vunpack.c.l.b16 %v1325
        %v1358 = vunpack.c.l.b16 %v1326
        %v1359 = vunpack.c.l.b16 %v1327
        %v1360 = vunpack.c.l.b16 %v1328
        %v1361 = vunpack.c.l.b16 %v1329
        %v1362 = vunpack.c.l.b16 %v1330
        %v1363 = vunpack.c.l.b16 %v1331
        %v1364 = vunpack.c.l.b16 %v1332
        %v1365 = vunpack.c.l.b16 %v1333
        %v1366 = vunpack.c.l.b16 %v1334
        %v1367 = vunpack.c.l.b16 %v1335
        %v1368 = vunpack.c.l.b16 %v1336
        %v1369 = vunpack.c.l.b16 %v1337
        %v1370 = vpack.c.b16 %v1355, %v1354
        %v1371 = vpack.c.b16 %v1357, %v1356
        %v1372 = vpack.c.b16 %v1359, %v1358
        %v1373 = vpack.c.b16 %v1361, %v1360
        %v1374 = vpack.c.b16 %v1363, %v1362
        %v1375 = vpack.c.b16 %v1365, %v1364
        %v1376 = vpack.c.b16 %v1367, %v1366
        %v1377 = vpack.c.b16 %v1369, %v1368
        %1386 = vmatprep.subr.bf16.mxu0 0
        %1387 = vmatpush1.bf16.msra.mxu0 %v1370
        %1388 = vmatprep.subr.bf16.mxu0 0
        %1389 = vmatpush1.bf16.msra.mxu0 %v1371
        %1390 = vmatprep.subr.bf16.mxu0 0
        %1391 = vmatpush1.bf16.msra.mxu0 %v1372
        %1392 = vmatprep.subr.bf16.mxu0 0
        %1393 = vmatpush1.bf16.msra.mxu0 %v1373
        %1394 = vmatprep.subr.bf16.mxu0 0
        %1395 = vmatpush1.bf16.msra.mxu0 %v1374
        %1396 = vmatprep.subr.bf16.mxu0 0
        %1397 = vmatpush1.bf16.msra.mxu0 %v1375
        %1398 = vmatprep.subr.bf16.mxu0 0
        %1399 = vmatpush1.bf16.msra.mxu0 %v1376
        %1400 = vmatprep.subr.bf16.mxu0 0
        %1401 = vmatpush1.bf16.msra.mxu0 %v1377
        %1402 = vmatprep.subr.bf16.mxu0 0
        %1403 = vmatpush1.bf16.msra.mxu0 0
        %1404 = vmatprep.subr.bf16.mxu0 0
        %1405 = vmatpush1.bf16.msra.mxu0 0
        %1406 = vmatprep.subr.bf16.mxu0 0
        %1407 = vmatpush1.bf16.msra.mxu0 0
        %1408 = vmatprep.subr.bf16.mxu0 0
        %1409 = vmatpush1.bf16.msra.mxu0 0
        %1410 = vmatprep.subr.bf16.mxu0 0
        %1411 = vmatpush1.bf16.msra.mxu0 0
        %1412 = vmatprep.subr.bf16.mxu0 0
        %1413 = vmatpush1.bf16.msra.mxu0 0
        %1414 = vmatprep.subr.bf16.mxu0 0
        %1415 = vmatpush1.bf16.msra.mxu0 0
        %1416 = vmatprep.subr.bf16.mxu0 0
        %1417 = vmatpush1.bf16.msra.mxu0 0
        %1418 = vmatprep.mubr.bf16.mxu0 0
        %1419 = vmatmul.mubr.bf16.gmra.mrb[0].mxu0 %v1313
        %v1420 = vpop.f32.mrb[0].mxu0
        %v1421 = vadd.f32 0.0, %v1420
        %v1422 = vpop.f32.mrb[0].mxu0
        %v1423 = vpop.f32.mrb[0].mxu0
        %v1424 = vpop.f32.mrb[0].mxu0
        %1425 = vdwg.mxu0
        %v1426 = vadd.f32 %v1321, %v1421
        %1427 = vadd.xlane.f32.xlu0 %v1426
        %v1428 = vpop.xlane.xlu0 %1427
        %v1429 = vrcp.pop 128.0
        %v1430 = vmul.f32 %v1428, %v1429
        %v1431 = vsub.f32 %v1426, %v1430
        %v1432 = vmul.f32 %v1431, %v1431
        %1433 = vadd.xlane.f32.xlu0 %v1432
        %v1434 = vpop.xlane.xlu0 %1433
        %v1435 = vmul.f32 %v1434, %v1429
        %v1436 = vadd.f32 %v1435, 1e-05
        %v1437 = vrsqrt.pop %v1436
        %v1438 = vmul.f32 %v1431, %v1437
        %v1439 = vld [vmem:[%s791] sm:$0x1]
        %v1441 = vlaneseq
        %v1442 = vshrl.u32 %v1441, 7
        %v1443 = vsub.s32 0, %v1442
        %v1444 = vrot.slane %v1439, %v1443
        %v1446 = vmul.f32 %v1438, %v1444
        %v1447 = vld [vmem:[%s794] sm:$0x1]
        %v1449 = vlaneseq
        %v1450 = vshrl.u32 %v1449, 7
        %v1451 = vsub.s32 0, %v1450
        %v1452 = vrot.slane %v1447, %v1451
        %v1454 = vadd.f32 %v1446, %v1452
        %1456 = vset.pattern.permute.xlu0 0
        %1457 = vperm.xlu0 %1456, %v819
        %v1458 = vpop.permute.xlu0 %1457
        %v1460 = vmul.f32 %v1454, %v1458
        %v1461 = vpack.c.bf16 %v1460, %v1460
        %v1462 = vld [vmem:[%s663] sm:$0xff]
        %v1463 = vld [vmem:[%s663 + $0x8] sm:$0xff]
        %v1464 = vld [vmem:[%s663 + $0x10] sm:$0xff]
        %v1465 = vld [vmem:[%s663 + $0x18] sm:$0xff]
        %v1466 = vld [vmem:[%s663 + $0x20] sm:$0xff]
        %v1467 = vld [vmem:[%s663 + $0x28] sm:$0xff]
        %v1468 = vld [vmem:[%s663 + $0x30] sm:$0xff]
        %v1469 = vld [vmem:[%s663 + $0x38] sm:$0xff]
        %v1470 = vld [vmem:[%s663 + $0x40] sm:$0xff]
        %v1471 = vld [vmem:[%s663 + $0x48] sm:$0xff]
        %v1472 = vld [vmem:[%s663 + $0x50] sm:$0xff]
        %v1473 = vld [vmem:[%s663 + $0x58] sm:$0xff]
        %v1474 = vld [vmem:[%s663 + $0x60] sm:$0xff]
        %v1475 = vld [vmem:[%s663 + $0x68] sm:$0xff]
        %v1476 = vld [vmem:[%s663 + $0x70] sm:$0xff]
        %v1477 = vld [vmem:[%s663 + $0x78] sm:$0xff]
        %v1478 = vld [vmem:[%s798] sm:$0x3]
        %v1480 = vlaneseq
        %v1481 = vshrl.u32 %v1480, 7
        %v1482 = vsub.s32 0, %v1481
        %v1483 = vrot.slane %v1478, %v1482
        %v1484 = vlaneseq
        %v1485 = vshrl.u32 %v1484, 7
        %v1486 = vsub.s32 1, %v1485
        %v1487 = vrot.slane %v1478, %v1486
        %v1506 = vunpack.c.l.b16 %v1462
        %v1507 = vunpack.c.h.b16 %v1462
        %v1508 = vunpack.c.l.b16 %v1463
        %v1509 = vunpack.c.h.b16 %v1463
        %v1510 = vunpack.c.l.b16 %v1464
        %v1511 = vunpack.c.h.b16 %v1464
        %v1512 = vunpack.c.l.b16 %v1465
        %v1513 = vunpack.c.h.b16 %v1465
        %v1514 = vunpack.c.l.b16 %v1466
        %v1515 = vunpack.c.h.b16 %v1466
        %v1516 = vunpack.c.l.b16 %v1467
        %v1517 = vunpack.c.h.b16 %v1467
        %v1518 = vunpack.c.l.b16 %v1468
        %v1519 = vunpack.c.h.b16 %v1468
        %v1520 = vunpack.c.l.b16 %v1469
        %v1521 = vunpack.c.h.b16 %v1469
        %v1522 = vunpack.c.l.b16 %v1470
        %v1523 = vunpack.c.h.b16 %v1470
        %v1524 = vunpack.c.l.b16 %v1471
        %v1525 = vunpack.c.h.b16 %v1471
        %v1526 = vunpack.c.l.b16 %v1472
        %v1527 = vunpack.c.h.b16 %v1472
        %v1528 = vunpack.c.l.b16 %v1473
        %v1529 = vunpack.c.h.b16 %v1473
        %v1530 = vunpack.c.l.b16 %v1474
        %v1531 = vunpack.c.h.b16 %v1474
        %v1532 = vunpack.c.l.b16 %v1475
        %v1533 = vunpack.c.h.b16 %v1475
        %v1534 = vunpack.c.l.b16 %v1476
        %v1535 = vunpack.c.h.b16 %v1476
        %v1536 = vunpack.c.l.b16 %v1477
        %v1537 = vunpack.c.h.b16 %v1477
        %v1538 = vpack.c.b16 %v1508, %v1506
        %v1539 = vpack.c.b16 %v1509, %v1507
        %v1540 = vpack.c.b16 %v1512, %v1510
        %v1541 = vpack.c.b16 %v1513, %v1511
        %v1542 = vpack.c.b16 %v1516, %v1514
        %v1543 = vpack.c.b16 %v1517, %v1515
        %v1544 = vpack.c.b16 %v1520, %v1518
        %v1545 = vpack.c.b16 %v1521, %v1519
        %v1546 = vpack.c.b16 %v1524, %v1522
        %v1547 = vpack.c.b16 %v1525, %v1523
        %v1548 = vpack.c.b16 %v1528, %v1526
        %v1549 = vpack.c.b16 %v1529, %v1527
        %v1550 = vpack.c.b16 %v1532, %v1530
        %v1551 = vpack.c.b16 %v1533, %v1531
        %v1552 = vpack.c.b16 %v1536, %v1534
        %v1553 = vpack.c.b16 %v1537, %v1535
        %1570 = vmatprep.subr.bf16.mxu0 %v1539
        %1571 = vmatpush1.bf16.msra.mxu0 %v1538
        %1572 = vmatprep.subr.bf16.mxu0 %v1541
        %1573 = vmatpush1.bf16.msra.mxu0 %v1540
        %1574 = vmatprep.subr.bf16.mxu0 %v1543
        %1575 = vmatpush1.bf16.msra.mxu0 %v1542
        %1576 = vmatprep.subr.bf16.mxu0 %v1545
        %1577 = vmatpush1.bf16.msra.mxu0 %v1544
        %1578 = vmatprep.subr.bf16.mxu0 %v1547
        %1579 = vmatpush1.bf16.msra.mxu0 %v1546
        %1580 = vmatprep.subr.bf16.mxu0 %v1549
        %1581 = vmatpush1.bf16.msra.mxu0 %v1548
        %1582 = vmatprep.subr.bf16.mxu0 %v1551
        %1583 = vmatpush1.bf16.msra.mxu0 %v1550
        %1584 = vmatprep.subr.bf16.mxu0 %v1553
        %1585 = vmatpush1.bf16.msra.mxu0 %v1552
        %1586 = vmatprep.subr.bf16.mxu0 0
        %1587 = vmatpush1.bf16.msra.mxu0 0
        %1588 = vmatprep.subr.bf16.mxu0 0
        %1589 = vmatpush1.bf16.msra.mxu0 0
        %1590 = vmatprep.subr.bf16.mxu0 0
        %1591 = vmatpush1.bf16.msra.mxu0 0
        %1592 = vmatprep.subr.bf16.mxu0 0
        %1593 = vmatpush1.bf16.msra.mxu0 0
        %1594 = vmatprep.subr.bf16.mxu0 0
        %1595 = vmatpush1.bf16.msra.mxu0 0
        %1596 = vmatprep.subr.bf16.mxu0 0
        %1597 = vmatpush1.bf16.msra.mxu0 0
        %1598 = vmatprep.subr.bf16.mxu0 0
        %1599 = vmatpush1.bf16.msra.mxu0 0
        %1600 = vmatprep.subr.bf16.mxu0 0
        %1601 = vmatpush1.bf16.msra.mxu0 0
        %1602 = vmatprep.mubr.bf16.mxu0 0
        %1603 = vmatmul.mubr.bf16.gmra.mrb[0].mxu0 %v1461
        %v1604 = vpop.f32.mrb[0].mxu0
        %v1605 = vadd.f32 %v1483, %v1604
        %v1606 = vpop.f32.mrb[0].mxu0
        %v1607 = vadd.f32 %v1487, %v1606
        %v1608 = vpop.f32.mrb[0].mxu0
        %v1609 = vpop.f32.mrb[0].mxu0
        %1610 = vdwg.mxu0
        %v1611 = vmax.f32 %v1605, 0.0
        %v1612 = vmax.f32 %v1607, 0.0
        %v1613 = vpack.c.bf16 %v1611, %v1611
        %v1614 = vpack.c.bf16 %v1612, %v1612
        %v1615 = vld [vmem:[%s672] sm:$0xf]
        %v1616 = vld [vmem:[%s672 + $0x4] sm:$0xf]
        %v1617 = vld [vmem:[%s672 + $0x8] sm:$0xf]
        %v1618 = vld [vmem:[%s672 + $0xc] sm:$0xf]
        %v1619 = vld [vmem:[%s672 + $0x10] sm:$0xf]
        %v1620 = vld [vmem:[%s672 + $0x14] sm:$0xf]
        %v1621 = vld [vmem:[%s672 + $0x18] sm:$0xf]
        %v1622 = vld [vmem:[%s672 + $0x1c] sm:$0xf]
        %v1623 = vld [vmem:[%s672 + $0x20] sm:$0xf]
        %v1624 = vld [vmem:[%s672 + $0x24] sm:$0xf]
        %v1625 = vld [vmem:[%s672 + $0x28] sm:$0xf]
        %v1626 = vld [vmem:[%s672 + $0x2c] sm:$0xf]
        %v1627 = vld [vmem:[%s672 + $0x30] sm:$0xf]
        %v1628 = vld [vmem:[%s672 + $0x34] sm:$0xf]
        %v1629 = vld [vmem:[%s672 + $0x38] sm:$0xf]
        %v1630 = vld [vmem:[%s672 + $0x3c] sm:$0xf]
        %v1631 = vld [vmem:[%s672 + $0x40] sm:$0xf]
        %v1632 = vld [vmem:[%s672 + $0x44] sm:$0xf]
        %v1633 = vld [vmem:[%s672 + $0x48] sm:$0xf]
        %v1634 = vld [vmem:[%s672 + $0x4c] sm:$0xf]
        %v1635 = vld [vmem:[%s672 + $0x50] sm:$0xf]
        %v1636 = vld [vmem:[%s672 + $0x54] sm:$0xf]
        %v1637 = vld [vmem:[%s672 + $0x58] sm:$0xf]
        %v1638 = vld [vmem:[%s672 + $0x5c] sm:$0xf]
        %v1639 = vld [vmem:[%s672 + $0x60] sm:$0xf]
        %v1640 = vld [vmem:[%s672 + $0x64] sm:$0xf]
        %v1641 = vld [vmem:[%s672 + $0x68] sm:$0xf]
        %v1642 = vld [vmem:[%s672 + $0x6c] sm:$0xf]
        %v1643 = vld [vmem:[%s672 + $0x70] sm:$0xf]
        %v1644 = vld [vmem:[%s672 + $0x74] sm:$0xf]
        %v1645 = vld [vmem:[%s672 + $0x78] sm:$0xf]
        %v1646 = vld [vmem:[%s672 + $0x7c] sm:$0xf]
        %v1647 = vld [vmem:[%s801] sm:$0x1]
        %v1649 = vlaneseq
        %v1650 = vshrl.u32 %v1649, 7
        %v1651 = vsub.s32 0, %v1650
        %v1652 = vrot.slane %v1647, %v1651
        %v1686 = vunpack.c.l.b16 %v1615
        %v1687 = vunpack.c.l.b16 %v1616
        %v1688 = vunpack.c.l.b16 %v1617
        %v1689 = vunpack.c.l.b16 %v1618
        %v1690 = vunpack.c.l.b16 %v1619
        %v1691 = vunpack.c.l.b16 %v1620
        %v1692 = vunpack.c.l.b16 %v1621
        %v1693 = vunpack.c.l.b16 %v1622
        %v1694 = vunpack.c.l.b16 %v1623
        %v1695 = vunpack.c.l.b16 %v1624
        %v1696 = vunpack.c.l.b16 %v1625
        %v1697 = vunpack.c.l.b16 %v1626
        %v1698 = vunpack.c.l.b16 %v1627
        %v1699 = vunpack.c.l.b16 %v1628
        %v1700 = vunpack.c.l.b16 %v1629
        %v1701 = vunpack.c.l.b16 %v1630
        %v1702 = vunpack.c.l.b16 %v1631
        %v1703 = vunpack.c.l.b16 %v1632
        %v1704 = vunpack.c.l.b16 %v1633
        %v1705 = vunpack.c.l.b16 %v1634
        %v1706 = vunpack.c.l.b16 %v1635
        %v1707 = vunpack.c.l.b16 %v1636
        %v1708 = vunpack.c.l.b16 %v1637
        %v1709 = vunpack.c.l.b16 %v1638
        %v1710 = vunpack.c.l.b16 %v1639
        %v1711 = vunpack.c.l.b16 %v1640
        %v1712 = vunpack.c.l.b16 %v1641
        %v1713 = vunpack.c.l.b16 %v1642
        %v1714 = vunpack.c.l.b16 %v1643
        %v1715 = vunpack.c.l.b16 %v1644
        %v1716 = vunpack.c.l.b16 %v1645
        %v1717 = vunpack.c.l.b16 %v1646
        %v1718 = vpack.c.b16 %v1687, %v1686
        %v1719 = vpack.c.b16 %v1689, %v1688
        %v1720 = vpack.c.b16 %v1691, %v1690
        %v1721 = vpack.c.b16 %v1693, %v1692
        %v1722 = vpack.c.b16 %v1695, %v1694
        %v1723 = vpack.c.b16 %v1697, %v1696
        %v1724 = vpack.c.b16 %v1699, %v1698
        %v1725 = vpack.c.b16 %v1701, %v1700
        %v1726 = vpack.c.b16 %v1703, %v1702
        %v1727 = vpack.c.b16 %v1705, %v1704
        %v1728 = vpack.c.b16 %v1707, %v1706
        %v1729 = vpack.c.b16 %v1709, %v1708
        %v1730 = vpack.c.b16 %v1711, %v1710
        %v1731 = vpack.c.b16 %v1713, %v1712
        %v1732 = vpack.c.b16 %v1715, %v1714
        %v1733 = vpack.c.b16 %v1717, %v1716
        %1750 = vmatprep.subr.bf16.mxu0 0
        %1751 = vmatpush1.bf16.msra.mxu0 %v1718
        %1752 = vmatprep.subr.bf16.mxu0 0
        %1753 = vmatpush1.bf16.msra.mxu0 %v1719
        %1754 = vmatprep.subr.bf16.mxu0 0
        %1755 = vmatpush1.bf16.msra.mxu0 %v1720
        %1756 = vmatprep.subr.bf16.mxu0 0
        %1757 = vmatpush1.bf16.msra.mxu0 %v1721
        %1758 = vmatprep.subr.bf16.mxu0 0
        %1759 = vmatpush1.bf16.msra.mxu0 %v1722
        %1760 = vmatprep.subr.bf16.mxu0 0
        %1761 = vmatpush1.bf16.msra.mxu0 %v1723
        %1762 = vmatprep.subr.bf16.mxu0 0
        %1763 = vmatpush1.bf16.msra.mxu0 %v1724
        %1764 = vmatprep.subr.bf16.mxu0 0
        %1765 = vmatpush1.bf16.msra.mxu0 %v1725
        %1766 = vmatprep.subr.bf16.mxu0 0
        %1767 = vmatpush1.bf16.msra.mxu0 %v1726
        %1768 = vmatprep.subr.bf16.mxu0 0
        %1769 = vmatpush1.bf16.msra.mxu0 %v1727
        %1770 = vmatprep.subr.bf16.mxu0 0
        %1771 = vmatpush1.bf16.msra.mxu0 %v1728
        %1772 = vmatprep.subr.bf16.mxu0 0
        %1773 = vmatpush1.bf16.msra.mxu0 %v1729
        %1774 = vmatprep.subr.bf16.mxu0 0
        %1775 = vmatpush1.bf16.msra.mxu0 %v1730
        %1776 = vmatprep.subr.bf16.mxu0 0
        %1777 = vmatpush1.bf16.msra.mxu0 %v1731
        %1778 = vmatprep.subr.bf16.mxu0 0
        %1779 = vmatpush1.bf16.msra.mxu0 %v1732
        %1780 = vmatprep.subr.bf16.mxu0 0
        %1781 = vmatpush1.bf16.msra.mxu0 %v1733
        %1782 = vmatprep.mubr.bf16.mxu0 %v1614
        %1783 = vmatmul.mubr.bf16.gmra.mrb[0].mxu0 %v1613
        %v1784 = vpop.f32.mrb[0].mxu0
        %v1785 = vadd.f32 %v1652, %v1784
        %v1786 = vpop.f32.mrb[0].mxu0
        %v1787 = vpop.f32.mrb[0].mxu0
        %v1788 = vpop.f32.mrb[0].mxu0
        %1789 = vdwg.mxu0
        %v1790 = vadd.f32 %v1785, %v1460
        %1791 = vadd.xlane.f32.xlu0 %v1790
        %v1792 = vpop.xlane.xlu0 %1791
        %v1793 = vmul.f32 %v1792, %v1429
        %v1794 = vsub.f32 %v1790, %v1793
        %v1795 = vmul.f32 %v1794, %v1794
        %1796 = vadd.xlane.f32.xlu0 %v1795
        %v1797 = vpop.xlane.xlu0 %1796
        %v1798 = vmul.f32 %v1797, %v1429
        %v1799 = vadd.f32 %v1798, 1e-05
        %v1800 = vrsqrt.pop %v1799
        %v1801 = vmul.f32 %v1794, %v1800
        %v1802 = vld [vmem:[%s804] sm:$0x1]
        %v1804 = vlaneseq
        %v1805 = vshrl.u32 %v1804, 7
        %v1806 = vsub.s32 0, %v1805
        %v1807 = vrot.slane %v1802, %v1806
        %v1809 = vmul.f32 %v1801, %v1807
        %v1810 = vld [vmem:[%s807] sm:$0x1]
        %v1812 = vlaneseq
        %v1813 = vshrl.u32 %v1812, 7
        %v1814 = vsub.s32 0, %v1813
        %v1815 = vrot.slane %v1810, %v1814
        %v1817 = vadd.f32 %v1809, %v1815
        %v1818 = vmul.f32 %v1817, %v1458
        %v1819 = vpack.c.bf16 %v1818, %v1818
        %1820 = vst [vmem:[#allocation2] sm:$0xf] %v1819
        %p1821 = scmp.eq.s32.totalorder %s43, 1
        // Predicated region
        $region101: #{tpu_custom_call.1} parent=79 // pred_check
          %p1822 = pneg %p1821
        $region102: #{tpu_custom_call.1} parent=79 // pred_check_branch
          %1824 = sbr.rel (%p1822) target = $region104
        $region103: #{tpu_custom_call.1} parent=79 // pred_region
          %1825 = vst [vmem:[%s770] sm:$0xff] %v1818
        $region104: #{tpu_custom_call.1} parent=79 // pred_fallthru
          _
        %s1826 = sand.u32 %s448, 1
        %s1827 = scalar_lea.sflag [#allocation5], %s1826
        %s1828 = sand.u32 %s448, 1
        %s1829 = smul.addr %s1828, 8
        %s1830 = scalar_lea.vmem [#allocation11], %s1829
        // Predicated region
        $region105: #{tpu_custom_call.1} parent=79 // pred_check
          %p1831 = pneg %p458
        $region106: #{tpu_custom_call.1} parent=79 // pred_check_branch
          %1833 = sbr.rel (%p1831) target = $region108
        $region107: #{tpu_custom_call.1} parent=79 // pred_region
          %s1835 = ssub.s32 128, 128
          %1836 = vsyncadd %s1827, %s1835
          %s1837 = smul.addr %s42, 128
          %s1838 = scalar_lea.hbm %s15, %s1837
          %s1840 = sshll.u32 %s1830, 4
          %s1841 = int_to_ptr.vmem [resolvable:$true] %s1840
          %1843 = dma.vmem_to_hbm [thread:$0]  %s1841, 128, %s1838, %s1827
        $region108: #{tpu_custom_call.1} parent=79 // pred_fallthru
          _
      $region80: #{tpu_custom_call.1} parent=5 // pred_fallthru
        _
      %p1844 = scmp.le.s32.totalorder 2, %s33
      // Predicated region
      $region109: #{tpu_custom_call.1} parent=5 // pred_check
        %p1845 = pneg %p1844
      $region110: #{tpu_custom_call.1} parent=5 // pred_check_branch
        %1847 = sbr.rel (%p1845) target = $region112
      $region111: #{tpu_custom_call.1} parent=5 // pred_region
        %s1848 = ssub.s32 %s33, 2
        // Predicated region
        $region113: #{tpu_custom_call.1} parent=111 // pred_check
          %p1849 = pneg %p464
        $region114: #{tpu_custom_call.1} parent=111 // pred_check_branch
          %1851 = sbr.rel (%p1849) target = $region116
        $region115: #{tpu_custom_call.1} parent=111 // pred_region
          %s1852 = sand.u32 %s449, 1
          %s1853 = scalar_lea.sflag [#allocation5], %s1852
          %s1854 = sand.u32 %s449, 1
          %s1855 = smul.addr %s1854, 8
          %s1856 = scalar_lea.vmem [#allocation11], %s1855
          %1857 = dma.done %s1853, 128
        $region116: #{tpu_custom_call.1} parent=111 // pred_fallthru
          _
      $region112: #{tpu_custom_call.1} parent=5 // pred_fallthru
        _
    $region6: #{tpu_custom_call.1} parent=1 // loop_footer
      %s37 = sadd.s32 1, %s33
    $region7: #{tpu_custom_call.1} parent=1 // loop_footer_branch
      %32 = sbr.rel target = $region3
    $region8: #{tpu_custom_call.1} parent=1 // loop_exit
      _
    %1858 = vsyncpa [#allocation4], 1
    %s1859 = scalar_lea.sflag [#allocation4], 1
    %1860 = vsyncpa %s1859, 1
    %1861 = vsyncpa [#allocation7], 1
    %s1862 = scalar_lea.sflag [#allocation7], 1
    %1863 = vsyncpa %s1862, 1
    %1864 = vsyncpa [#allocation10], 1
    %s1865 = scalar_lea.sflag [#allocation10], 1
    %1866 = vsyncpa %s1865, 1
    %1867 = vsyncpa [#allocation5], 1
    %s1868 = scalar_lea.sflag [#allocation5], 1
    %1869 = vsyncpa %s1868, 1

</llo_original>
